<compile_context>
chip_gen: v7x
topology: tpu7x:2x2x1
jax: 0.10.0
libtpu: 0.0.40
codegen_flags: <defaults>
</compile_context>

<pallas_src>
import functools

import jax
import jax.numpy as jnp
from jax.experimental import pallas as pl
from jax.experimental.pallas import tpu as pltpu


# ------------------------------- helpers -------------------------------------

def _pick_tile(n, candidates):
    for c in candidates:
        if n % c == 0:
            return c
    # TODO(synk): a W that is not a multiple of 128 (e.g. 431 at the real
    # shape) should be padded to a lane multiple outside the kernel; here we
    # fall back to a single full-W tile.
    return n


def _elu(v):
    # ELU(alpha=1); exp argument clamped to <= 0 so it never overflows.
    return jnp.where(v > 0, v, jnp.exp(jnp.minimum(v, 0.0)) - 1.0)


# ----------------------------- block kernel ----------------------------------

def _block_kernel(has_pw, x_ref, w1_ref, b1_ref, dw_ref, db_ref, *rest):
    """One `blockN`:
       Conv2d(Cin->Cout,(3,1),pad=(1,0)) [+ folded BatchNorm]
       -> depthwise Conv2d((3,1),groups=Cout) [-> Conv2d 1x1]
       -> ELU -> AvgPool2d((2,1)) -> Dropout (identity at inference)."""
    if has_pw:
        pw_ref, pb_ref, o_ref, pad_ref = rest
    else:
        pw_ref = pb_ref = None
        o_ref, pad_ref = rest

    cin = x_ref.shape[1]
    cout = o_ref.shape[1]
    H = x_ref.shape[2]
    TW = x_ref.shape[3]
    H2 = o_ref.shape[2]          # = H // 2 (floor)
    f32 = jnp.float32
    G = 8                        # top guard band so the main store is aligned

    # Zero the two guard rows adjacent to the data region (rows G-1 and G+H).
    zero_row = jnp.zeros((1, TW), f32)
    pad_ref[pl.ds(G - 1, 1), :] = zero_row
    pad_ref[pl.ds(G + H, 1), :] = zero_row

    # ---- Conv2d(Cin->Cout, (3,1), pad (1,0)); BN already folded into w1/b1 --
    # out[h] = sum_ci w[0]*x[h-1] + w[1]*x[h] + w[2]*x[h+1]  (zero padded)
    acc = [None] * cout
    for ci in range(cin):
        xc = x_ref[0, ci].astype(f32)                    # (H, TW)
        pad_ref[pl.ds(G, H), :] = xc
        x_dn = pad_ref[pl.ds(G - 1, H), :]               # x[h-1], 0 at h=0
        x_up = pad_ref[pl.ds(G + 1, H), :]               # x[h+1], 0 at h=H-1
        for co in range(cout):
            contrib = (w1_ref[ci, co] * x_dn
                       + w1_ref[cin + ci, co] * xc
                       + w1_ref[2 * cin + ci, co] * x_up)
            acc[co] = contrib if acc[co] is None else acc[co] + contrib

    # ---- depthwise Conv2d((3,1), groups=Cout, pad (1,0)) + bias -------------
    feats = []
    for co in range(cout):
        y = acc[co] + b1_ref[0, co]
        pad_ref[pl.ds(G, H), :] = y
        z = (dw_ref[1, co] * y
             + dw_ref[0, co] * pad_ref[pl.ds(G - 1, H), :]
             + dw_ref[2, co] * pad_ref[pl.ds(G + 1, H), :]
             + db_ref[0, co])
        feats.append(z)

    # ---- optional pointwise Conv2d 1x1 (blocks 2 and 4) ---------------------
    if has_pw:
        mixed = []
        for co in range(cout):
            m = None
            for ci in range(cout):
                t = feats[ci] * pw_ref[ci, co]
                m = t if m is None else m + t
            mixed.append(m + pb_ref[0, co])
        feats = mixed

    # ---- ELU -> AvgPool2d((2,1),(2,1)) (floor: odd trailing row dropped) ----
    for co in range(cout):
        v = _elu(feats[co])
        pad_ref[pl.ds(G, H), :] = v                       # rows G..G+H-1 = v
        even = pad_ref[pl.ds(G, H2, stride=2), :]         # v[0], v[2], ...
        odd = pad_ref[pl.ds(G + 1, H2, stride=2), :]      # v[1], v[3], ...
        o_ref[0, co] = (0.5 * (even + odd)).astype(o_ref.dtype)


def block_forward(x, p, has_pw):
    B, cin, H, W = x.shape
    cout = p["w1"].shape[2]
    H2 = H // 2
    assert H2 >= 1, "AvgPool((2,1)) needs H >= 2"
    TW = _pick_tile(W, (256, 128))

    # Fold BatchNorm (inference running stats) into the first conv.
    eps = 1e-5
    scale = p["bn_gamma"] / jnp.sqrt(p["bn_var"] + eps)          # (1, cout)
    shift = p["bn_beta"] - p["bn_mean"] * scale                  # (1, cout)
    w1 = (p["w1"] * scale.reshape(1, 1, cout)).reshape(3 * cin, cout)
    b1 = p["b1"] * scale + shift                                 # (1, cout)

    smem = pl.BlockSpec(memory_space=pltpu.MemorySpace.SMEM)
    in_specs = [pl.BlockSpec((1, cin, H, TW), lambda b, w: (b, 0, 0, w)),
                smem, smem, smem, smem]
    args = [x, w1, b1, p["dw"], p["db"]]
    if has_pw:
        in_specs += [smem, smem]
        args += [p["pw"], p["pb"]]

    return pl.pallas_call(
        functools.partial(_block_kernel, has_pw),
        grid=(B, W // TW),
        in_specs=in_specs,
        out_specs=pl.BlockSpec((1, cout, H2, TW), lambda b, w: (b, 0, 0, w)),
        out_shape=jax.ShapeDtypeStruct((B, cout, H2, W), jnp.bfloat16),
        scratch_shapes=[pltpu.VMEM((H + 9, TW), jnp.float32)],
        compiler_params=pltpu.CompilerParams(
            dimension_semantics=("parallel", "parallel"),
            vmem_limit_bytes=48 * 1024 * 1024),
    )(*args)


# ------------------------------- FC kernel -----------------------------------

def _fc_kernel(x_ref, w_ref, b_ref, o_ref, acc_ref):
    k = pl.program_id(1)

    @pl.when(k == 0)
    def _init():
        acc_ref[...] = jnp.zeros_like(acc_ref)

    acc_ref[...] += jnp.dot(x_ref[...].astype(jnp.float32), w_ref[...],
                            preferred_element_type=jnp.float32)

    @pl.when(k == pl.num_programs(1) - 1)
    def _done():
        o_ref[...] = acc_ref[...] + b_ref[...]


def fc_forward(x_flat, w, b):
    B, F = x_flat.shape
    N = w.shape[1]
    TK = _pick_tile(F, (512, 256, 128))
    return pl.pallas_call(
        _fc_kernel,
        grid=(1, F // TK),
        in_specs=[pl.BlockSpec((B, TK), lambda i, k: (i, k)),
                  pl.BlockSpec((TK, N), lambda i, k: (k, 0)),
                  pl.BlockSpec((1, N), lambda i, k: (0, 0))],
        out_specs=pl.BlockSpec((B, N), lambda i, k: (i, 0)),
        out_shape=jax.ShapeDtypeStruct((B, N), jnp.float32),
        scratch_shapes=[pltpu.VMEM((B, N), jnp.float32)],
        compiler_params=pltpu.CompilerParams(
            dimension_semantics=("parallel", "arbitrary")),
    )(x_flat, w, b)


# ----------------------------- full forward ----------------------------------

def cnn_forward(x_nchw, params):
    x = x_nchw.astype(jnp.float32)            # stays NCHW: no transpose passes
    x = block_forward(x, params["block1"], has_pw=False)
    x = block_forward(x, params["block2"], has_pw=True)
    x = block_forward(x, params["block3"], has_pw=False)
    x = block_forward(x, params["block4"], has_pw=True)
    B = x.shape[0]
    x_flat = x.reshape(B, -1)                 # == PyTorch Flatten of NCHW
    return fc_forward(x_flat, params["fc_w"], params["fc_b"])


# ------------------------- deterministic parameters --------------------------

def _init_block(key, cin, cout, has_pw):
    ks = jax.random.split(key, 10)
    p = {
        "w1": 0.1 * jax.random.normal(ks[0], (3, cin, cout), jnp.float32),
        "b1": 0.1 * jax.random.normal(ks[1], (1, cout), jnp.float32),
        "bn_gamma": 1.0 + 0.1 * jax.random.normal(ks[2], (1, cout), jnp.float32),
        "bn_beta": 0.1 * jax.random.normal(ks[3], (1, cout), jnp.float32),
        "bn_mean": 0.1 * jax.random.normal(ks[4], (1, cout), jnp.float32),
        "bn_var": 1.0 + 0.1 * jax.random.uniform(ks[5], (1, cout), jnp.float32),
        "dw": 0.1 * jax.random.normal(ks[6], (3, cout), jnp.float32),
        "db": 0.1 * jax.random.normal(ks[7], (1, cout), jnp.float32),
    }
    if has_pw:
        p["pw"] = 0.1 * jax.random.normal(ks[8], (cout, cout), jnp.float32)
        p["pb"] = 0.1 * jax.random.normal(ks[9], (1, cout), jnp.float32)
    return p


def init_params(key, input_channels, num_classes, flat_features):
    k1, k2, k3, k4, kw, kb = jax.random.split(key, 6)
    return {
        "block1": _init_block(k1, input_channels, 8, has_pw=False),
        "block2": _init_block(k2, 8, 16, has_pw=True),
        "block3": _init_block(k3, 16, 16, has_pw=False),
        "block4": _init_block(k4, 16, 16, has_pw=True),
        "fc_w": 0.1 * jax.random.normal(kw, (flat_features, num_classes), jnp.float32),
        "fc_b": 0.1 * jax.random.normal(kb, (1, num_classes), jnp.float32),
    }


# ----------------------------------- main ------------------------------------

if __name__ == "__main__":
    B, Cin, H, W = 2, 4, 16, 16      # small stand-in for (64, 1025, 431)
    num_classes = 10

    key = jax.random.PRNGKey(0)
    kx, kp = jax.random.split(key)
    x = jax.random.normal(kx, (B, Cin, H, W), jnp.float32)   # NCHW like PyTorch

    H_final = H // 2 // 2 // 2 // 2          # four AvgPool((2,1)) stages (floor)
    flat_features = 16 * H_final * W
    params = init_params(kp, Cin, num_classes, flat_features)

    out = cnn_forward(x, params)
    out = jax.block_until_ready(out)
    assert out.shape == (B, num_classes)
    assert bool(jnp.all(jnp.isfinite(out)))
    print("KERNEL_OK")
</pallas_src>

<mosaic_0001>
module attributes {stable_mosaic.version = 11 : i64} {
  func.func @_block_kernel(%arg0: i32, %arg1: i32, %arg2: memref<1x4x16x16xf32, #tpu.memory_space<vmem>>, %arg3: memref<12x8xf32, #tpu.memory_space<smem>>, %arg4: memref<1x8xf32, #tpu.memory_space<smem>>, %arg5: memref<3x8xf32, #tpu.memory_space<smem>>, %arg6: memref<1x8xf32, #tpu.memory_space<smem>>, %arg7: memref<1x8x8x16xbf16, #tpu.memory_space<vmem>>, %arg8: memref<25x16xf32, #tpu.memory_space<vmem>>) attributes {dimension_semantics = [#tpu.dimension_semantics<parallel>, #tpu.dimension_semantics<parallel>], iteration_bounds = array<i64: 2, 1>, scalar_prefetch = 0 : i64, scratch_operands = 1 : i64, tpu.core_type = #tpu.core_type<tc>, window_params = [{transform_indices = @transform_0, window_bounds = array<i64: 1, 4, 16, 16>}, {transform_indices = @transform_1, window_bounds = array<i64: 12, 8>}, {transform_indices = @transform_2, window_bounds = array<i64: 1, 8>}, {transform_indices = @transform_3, window_bounds = array<i64: 3, 8>}, {transform_indices = @transform_4, window_bounds = array<i64: 1, 8>}, {transform_indices = @transform_5, window_bounds = array<i64: 1, 8, 8, 16>}]} {
    %cst = arith.constant 0.000000e+00 : f32
    %0 = vector.broadcast %cst : f32 to vector<1x16xf32>
    %c7 = arith.constant 7 : index
    %c0 = arith.constant 0 : index
    %1 = vector.load %arg8[%c7, %c0] : memref<25x16xf32, #tpu.memory_space<vmem>>, vector<1x16xf32>
    tpu.vector_store %arg8[%c7, %c0], %0 {strides = array<i32>} : memref<25x16xf32, #tpu.memory_space<vmem>>, vector<1x16xf32>,
    %c24 = arith.constant 24 : index
    %c0_0 = arith.constant 0 : index
    %2 = vector.load %arg8[%c24, %c0_0] : memref<25x16xf32, #tpu.memory_space<vmem>>, vector<1x16xf32>
    tpu.vector_store %arg8[%c24, %c0_0], %0 {strides = array<i32>} : memref<25x16xf32, #tpu.memory_space<vmem>>, vector<1x16xf32>,
    %c0_1 = arith.constant 0 : index
    %c0_2 = arith.constant 0 : index
    %c0_3 = arith.constant 0 : index
    %c0_4 = arith.constant 0 : index
    %3 = vector.load %arg2[%c0_1, %c0_2, %c0_3, %c0_4] : memref<1x4x16x16xf32, #tpu.memory_space<vmem>>, vector<1x1x16x16xf32>
    %4 = vector.shape_cast %3 : vector<1x1x16x16xf32> to vector<16x16xf32>
    %c8 = arith.constant 8 : index
    %c0_5 = arith.constant 0 : index
    %5 = vector.load %arg8[%c8, %c0_5] : memref<25x16xf32, #tpu.memory_space<vmem>>, vector<16x16xf32>
    tpu.vector_store %arg8[%c8, %c0_5], %4 {strides = array<i32>} : memref<25x16xf32, #tpu.memory_space<vmem>>, vector<16x16xf32>,
    %c7_6 = arith.constant 7 : index
    %c0_7 = arith.constant 0 : index
    %6 = vector.load %arg8[%c7_6, %c0_7] : memref<25x16xf32, #tpu.memory_space<vmem>>, vector<16x16xf32>
    %c9 = arith.constant 9 : index
    %c0_8 = arith.constant 0 : index
    %7 = vector.load %arg8[%c9, %c0_8] : memref<25x16xf32, #tpu.memory_space<vmem>>, vector<16x16xf32>
    %c0_9 = arith.constant 0 : index
    %c0_10 = arith.constant 0 : index
    %8 = memref.load %arg3[%c0_9, %c0_10] : memref<12x8xf32, #tpu.memory_space<smem>>
    %9 = vector.broadcast %8 : f32 to vector<16x16xf32>
    %10 = arith.mulf %9, %6 : vector<16x16xf32>
    %c4 = arith.constant 4 : index
    %c0_11 = arith.constant 0 : index
    %11 = memref.load %arg3[%c4, %c0_11] : memref<12x8xf32, #tpu.memory_space<smem>>
    %12 = vector.broadcast %11 : f32 to vector<16x16xf32>
    %13 = arith.mulf %12, %4 : vector<16x16xf32>
    %14 = arith.addf %10, %13 : vector<16x16xf32>
    %c8_12 = arith.constant 8 : index
    %c0_13 = arith.constant 0 : index
    %15 = memref.load %arg3[%c8_12, %c0_13] : memref<12x8xf32, #tpu.memory_space<smem>>
    %16 = vector.broadcast %15 : f32 to vector<16x16xf32>
    %17 = arith.mulf %16, %7 : vector<16x16xf32>
    %18 = arith.addf %14, %17 : vector<16x16xf32>
    %c0_14 = arith.constant 0 : index
    %c1 = arith.constant 1 : index
    %19 = memref.load %arg3[%c0_14, %c1] : memref<12x8xf32, #tpu.memory_space<smem>>
    %20 = vector.broadcast %19 : f32 to vector<16x16xf32>
    %21 = arith.mulf %20, %6 : vector<16x16xf32>
    %c4_15 = arith.constant 4 : index
    %c1_16 = arith.constant 1 : index
    %22 = memref.load %arg3[%c4_15, %c1_16] : memref<12x8xf32, #tpu.memory_space<smem>>
    %23 = vector.broadcast %22 : f32 to vector<16x16xf32>
    %24 = arith.mulf %23, %4 : vector<16x16xf32>
    %25 = arith.addf %21, %24 : vector<16x16xf32>
    %c8_17 = arith.constant 8 : index
    %c1_18 = arith.constant 1 : index
    %26 = memref.load %arg3[%c8_17, %c1_18] : memref<12x8xf32, #tpu.memory_space<smem>>
    %27 = vector.broadcast %26 : f32 to vector<16x16xf32>
    %28 = arith.mulf %27, %7 : vector<16x16xf32>
    %29 = arith.addf %25, %28 : vector<16x16xf32>
    %c0_19 = arith.constant 0 : index
    %c2 = arith.constant 2 : index
    %30 = memref.load %arg3[%c0_19, %c2] : memref<12x8xf32, #tpu.memory_space<smem>>
    %31 = vector.broadcast %30 : f32 to vector<16x16xf32>
    %32 = arith.mulf %31, %6 : vector<16x16xf32>
    %c4_20 = arith.constant 4 : index
    %c2_21 = arith.constant 2 : index
    %33 = memref.load %arg3[%c4_20, %c2_21] : memref<12x8xf32, #tpu.memory_space<smem>>
    %34 = vector.broadcast %33 : f32 to vector<16x16xf32>
    %35 = arith.mulf %34, %4 : vector<16x16xf32>
    %36 = arith.addf %32, %35 : vector<16x16xf32>
    %c8_22 = arith.constant 8 : index
    %c2_23 = arith.constant 2 : index
    %37 = memref.load %arg3[%c8_22, %c2_23] : memref<12x8xf32, #tpu.memory_space<smem>>
    %38 = vector.broadcast %37 : f32 to vector<16x16xf32>
    %39 = arith.mulf %38, %7 : vector<16x16xf32>
    %40 = arith.addf %36, %39 : vector<16x16xf32>
    %c0_24 = arith.constant 0 : index
    %c3 = arith.constant 3 : index
    %41 = memref.load %arg3[%c0_24, %c3] : memref<12x8xf32, #tpu.memory_space<smem>>
    %42 = vector.broadcast %41 : f32 to vector<16x16xf32>
    %43 = arith.mulf %42, %6 : vector<16x16xf32>
    %c4_25 = arith.constant 4 : index
    %c3_26 = arith.constant 3 : index
    %44 = memref.load %arg3[%c4_25, %c3_26] : memref<12x8xf32, #tpu.memory_space<smem>>
    %45 = vector.broadcast %44 : f32 to vector<16x16xf32>
    %46 = arith.mulf %45, %4 : vector<16x16xf32>
    %47 = arith.addf %43, %46 : vector<16x16xf32>
    %c8_27 = arith.constant 8 : index
    %c3_28 = arith.constant 3 : index
    %48 = memref.load %arg3[%c8_27, %c3_28] : memref<12x8xf32, #tpu.memory_space<smem>>
    %49 = vector.broadcast %48 : f32 to vector<16x16xf32>
    %50 = arith.mulf %49, %7 : vector<16x16xf32>
    %51 = arith.addf %47, %50 : vector<16x16xf32>
    %c0_29 = arith.constant 0 : index
    %c4_30 = arith.constant 4 : index
    %52 = memref.load %arg3[%c0_29, %c4_30] : memref<12x8xf32, #tpu.memory_space<smem>>
    %53 = vector.broadcast %52 : f32 to vector<16x16xf32>
    %54 = arith.mulf %53, %6 : vector<16x16xf32>
    %c4_31 = arith.constant 4 : index
    %c4_32 = arith.constant 4 : index
    %55 = memref.load %arg3[%c4_31, %c4_32] : memref<12x8xf32, #tpu.memory_space<smem>>
    %56 = vector.broadcast %55 : f32 to vector<16x16xf32>
    %57 = arith.mulf %56, %4 : vector<16x16xf32>
    %58 = arith.addf %54, %57 : vector<16x16xf32>
    %c8_33 = arith.constant 8 : index
    %c4_34 = arith.constant 4 : index
    %59 = memref.load %arg3[%c8_33, %c4_34] : memref<12x8xf32, #tpu.memory_space<smem>>
    %60 = vector.broadcast %59 : f32 to vector<16x16xf32>
    %61 = arith.mulf %60, %7 : vector<16x16xf32>
    %62 = arith.addf %58, %61 : vector<16x16xf32>
    %c0_35 = arith.constant 0 : index
    %c5 = arith.constant 5 : index
    %63 = memref.load %arg3[%c0_35, %c5] : memref<12x8xf32, #tpu.memory_space<smem>>
    %64 = vector.broadcast %63 : f32 to vector<16x16xf32>
    %65 = arith.mulf %64, %6 : vector<16x16xf32>
    %c4_36 = arith.constant 4 : index
    %c5_37 = arith.constant 5 : index
    %66 = memref.load %arg3[%c4_36, %c5_37] : memref<12x8xf32, #tpu.memory_space<smem>>
    %67 = vector.broadcast %66 : f32 to vector<16x16xf32>
    %68 = arith.mulf %67, %4 : vector<16x16xf32>
    %69 = arith.addf %65, %68 : vector<16x16xf32>
    %c8_38 = arith.constant 8 : index
    %c5_39 = arith.constant 5 : index
    %70 = memref.load %arg3[%c8_38, %c5_39] : memref<12x8xf32, #tpu.memory_space<smem>>
    %71 = vector.broadcast %70 : f32 to vector<16x16xf32>
    %72 = arith.mulf %71, %7 : vector<16x16xf32>
    %73 = arith.addf %69, %72 : vector<16x16xf32>
    %c0_40 = arith.constant 0 : index
    %c6 = arith.constant 6 : index
    %74 = memref.load %arg3[%c0_40, %c6] : memref<12x8xf32, #tpu.memory_space<smem>>
    %75 = vector.broadcast %74 : f32 to vector<16x16xf32>
    %76 = arith.mulf %75, %6 : vector<16x16xf32>
    %c4_41 = arith.constant 4 : index
    %c6_42 = arith.constant 6 : index
    %77 = memref.load %arg3[%c4_41, %c6_42] : memref<12x8xf32, #tpu.memory_space<smem>>
    %78 = vector.broadcast %77 : f32 to vector<16x16xf32>
    %79 = arith.mulf %78, %4 : vector<16x16xf32>
    %80 = arith.addf %76, %79 : vector<16x16xf32>
    %c8_43 = arith.constant 8 : index
    %c6_44 = arith.constant 6 : index
    %81 = memref.load %arg3[%c8_43, %c6_44] : memref<12x8xf32, #tpu.memory_space<smem>>
    %82 = vector.broadcast %81 : f32 to vector<16x16xf32>
    %83 = arith.mulf %82, %7 : vector<16x16xf32>
    %84 = arith.addf %80, %83 : vector<16x16xf32>
    %c0_45 = arith.constant 0 : index
    %c7_46 = arith.constant 7 : index
    %85 = memref.load %arg3[%c0_45, %c7_46] : memref<12x8xf32, #tpu.memory_space<smem>>
    %86 = vector.broadcast %85 : f32 to vector<16x16xf32>
    %87 = arith.mulf %86, %6 : vector<16x16xf32>
    %c4_47 = arith.constant 4 : index
    %c7_48 = arith.constant 7 : index
    %88 = memref.load %arg3[%c4_47, %c7_48] : memref<12x8xf32, #tpu.memory_space<smem>>
    %89 = vector.broadcast %88 : f32 to vector<16x16xf32>
    %90 = arith.mulf %89, %4 : vector<16x16xf32>
    %91 = arith.addf %87, %90 : vector<16x16xf32>
    %c8_49 = arith.constant 8 : index
    %c7_50 = arith.constant 7 : index
    %92 = memref.load %arg3[%c8_49, %c7_50] : memref<12x8xf32, #tpu.memory_space<smem>>
    %93 = vector.broadcast %92 : f32 to vector<16x16xf32>
    %94 = arith.mulf %93, %7 : vector<16x16xf32>
    %95 = arith.addf %91, %94 : vector<16x16xf32>
    %c0_51 = arith.constant 0 : index
    %c1_52 = arith.constant 1 : index
    %c0_53 = arith.constant 0 : index
    %c0_54 = arith.constant 0 : index
    %96 = vector.load %arg2[%c0_51, %c1_52, %c0_53, %c0_54] : memref<1x4x16x16xf32, #tpu.memory_space<vmem>>, vector<1x1x16x16xf32>
    %97 = vector.shape_cast %96 : vector<1x1x16x16xf32> to vector<16x16xf32>
    %c8_55 = arith.constant 8 : index
    %c0_56 = arith.constant 0 : index
    %98 = vector.load %arg8[%c8_55, %c0_56] : memref<25x16xf32, #tpu.memory_space<vmem>>, vector<16x16xf32>
    tpu.vector_store %arg8[%c8_55, %c0_56], %97 {strides = array<i32>} : memref<25x16xf32, #tpu.memory_space<vmem>>, vector<16x16xf32>,
    %c7_57 = arith.constant 7 : index
    %c0_58 = arith.constant 0 : index
    %99 = vector.load %arg8[%c7_57, %c0_58] : memref<25x16xf32, #tpu.memory_space<vmem>>, vector<16x16xf32>
    %c9_59 = arith.constant 9 : index
    %c0_60 = arith.constant 0 : index
    %100 = vector.load %arg8[%c9_59, %c0_60] : memref<25x16xf32, #tpu.memory_space<vmem>>, vector<16x16xf32>
    %c1_61 = arith.constant 1 : index
    %c0_62 = arith.constant 0 : index
    %101 = memref.load %arg3[%c1_61, %c0_62] : memref<12x8xf32, #tpu.memory_space<smem>>
    %102 = vector.broadcast %101 : f32 to vector<16x16xf32>
    %103 = arith.mulf %102, %99 : vector<16x16xf32>
    %c5_63 = arith.constant 5 : index
    %c0_64 = arith.constant 0 : index
    %104 = memref.load %arg3[%c5_63, %c0_64] : memref<12x8xf32, #tpu.memory_space<smem>>
    %105 = vector.broadcast %104 : f32 to vector<16x16xf32>
    %106 = arith.mulf %105, %97 : vector<16x16xf32>
    %107 = arith.addf %103, %106 : vector<16x16xf32>
    %c9_65 = arith.constant 9 : index
    %c0_66 = arith.constant 0 : index
    %108 = memref.load %arg3[%c9_65, %c0_66] : memref<12x8xf32, #tpu.memory_space<smem>>
    %109 = vector.broadcast %108 : f32 to vector<16x16xf32>
    %110 = arith.mulf %109, %100 : vector<16x16xf32>
    %111 = arith.addf %107, %110 : vector<16x16xf32>
    %112 = arith.addf %18, %111 : vector<16x16xf32>
    %c1_67 = arith.constant 1 : index
    %c1_68 = arith.constant 1 : index
    %113 = memref.load %arg3[%c1_67, %c1_68] : memref<12x8xf32, #tpu.memory_space<smem>>
    %114 = vector.broadcast %113 : f32 to vector<16x16xf32>
    %115 = arith.mulf %114, %99 : vector<16x16xf32>
    %c5_69 = arith.constant 5 : index
    %c1_70 = arith.constant 1 : index
    %116 = memref.load %arg3[%c5_69, %c1_70] : memref<12x8xf32, #tpu.memory_space<smem>>
    %117 = vector.broadcast %116 : f32 to vector<16x16xf32>
    %118 = arith.mulf %117, %97 : vector<16x16xf32>
    %119 = arith.addf %115, %118 : vector<16x16xf32>
    %c9_71 = arith.constant 9 : index
    %c1_72 = arith.constant 1 : index
    %120 = memref.load %arg3[%c9_71, %c1_72] : memref<12x8xf32, #tpu.memory_space<smem>>
    %121 = vector.broadcast %120 : f32 to vector<16x16xf32>
    %122 = arith.mulf %121, %100 : vector<16x16xf32>
    %123 = arith.addf %119, %122 : vector<16x16xf32>
    %124 = arith.addf %29, %123 : vector<16x16xf32>
    %c1_73 = arith.constant 1 : index
    %c2_74 = arith.constant 2 : index
    %125 = memref.load %arg3[%c1_73, %c2_74] : memref<12x8xf32, #tpu.memory_space<smem>>
    %126 = vector.broadcast %125 : f32 to vector<16x16xf32>
    %127 = arith.mulf %126, %99 : vector<16x16xf32>
    %c5_75 = arith.constant 5 : index
    %c2_76 = arith.constant 2 : index
    %128 = memref.load %arg3[%c5_75, %c2_76] : memref<12x8xf32, #tpu.memory_space<smem>>
    %129 = vector.broadcast %128 : f32 to vector<16x16xf32>
    %130 = arith.mulf %129, %97 : vector<16x16xf32>
    %131 = arith.addf %127, %130 : vector<16x16xf32>
    %c9_77 = arith.constant 9 : index
    %c2_78 = arith.constant 2 : index
    %132 = memref.load %arg3[%c9_77, %c2_78] : memref<12x8xf32, #tpu.memory_space<smem>>
    %133 = vector.broadcast %132 : f32 to vector<16x16xf32>
    %134 = arith.mulf %133, %100 : vector<16x16xf32>
    %135 = arith.addf %131, %134 : vector<16x16xf32>
    %136 = arith.addf %40, %135 : vector<16x16xf32>
    %c1_79 = arith.constant 1 : index
    %c3_80 = arith.constant 3 : index
    %137 = memref.load %arg3[%c1_79, %c3_80] : memref<12x8xf32, #tpu.memory_space<smem>>
    %138 = vector.broadcast %137 : f32 to vector<16x16xf32>
    %139 = arith.mulf %138, %99 : vector<16x16xf32>
    %c5_81 = arith.constant 5 : index
    %c3_82 = arith.constant 3 : index
    %140 = memref.load %arg3[%c5_81, %c3_82] : memref<12x8xf32, #tpu.memory_space<smem>>
    %141 = vector.broadcast %140 : f32 to vector<16x16xf32>
    %142 = arith.mulf %141, %97 : vector<16x16xf32>
    %143 = arith.addf %139, %142 : vector<16x16xf32>
    %c9_83 = arith.constant 9 : index
    %c3_84 = arith.constant 3 : index
    %144 = memref.load %arg3[%c9_83, %c3_84] : memref<12x8xf32, #tpu.memory_space<smem>>
    %145 = vector.broadcast %144 : f32 to vector<16x16xf32>
    %146 = arith.mulf %145, %100 : vector<16x16xf32>
    %147 = arith.addf %143, %146 : vector<16x16xf32>
    %148 = arith.addf %51, %147 : vector<16x16xf32>
    %c1_85 = arith.constant 1 : index
    %c4_86 = arith.constant 4 : index
    %149 = memref.load %arg3[%c1_85, %c4_86] : memref<12x8xf32, #tpu.memory_space<smem>>
    %150 = vector.broadcast %149 : f32 to vector<16x16xf32>
    %151 = arith.mulf %150, %99 : vector<16x16xf32>
    %c5_87 = arith.constant 5 : index
    %c4_88 = arith.constant 4 : index
    %152 = memref.load %arg3[%c5_87, %c4_88] : memref<12x8xf32, #tpu.memory_space<smem>>
    %153 = vector.broadcast %152 : f32 to vector<16x16xf32>
    %154 = arith.mulf %153, %97 : vector<16x16xf32>
    %155 = arith.addf %151, %154 : vector<16x16xf32>
    %c9_89 = arith.constant 9 : index
    %c4_90 = arith.constant 4 : index
    %156 = memref.load %arg3[%c9_89, %c4_90] : memref<12x8xf32, #tpu.memory_space<smem>>
    %157 = vector.broadcast %156 : f32 to vector<16x16xf32>
    %158 = arith.mulf %157, %100 : vector<16x16xf32>
    %159 = arith.addf %155, %158 : vector<16x16xf32>
    %160 = arith.addf %62, %159 : vector<16x16xf32>
    %c1_91 = arith.constant 1 : index
    %c5_92 = arith.constant 5 : index
    %161 = memref.load %arg3[%c1_91, %c5_92] : memref<12x8xf32, #tpu.memory_space<smem>>
    %162 = vector.broadcast %161 : f32 to vector<16x16xf32>
    %163 = arith.mulf %162, %99 : vector<16x16xf32>
    %c5_93 = arith.constant 5 : index
    %c5_94 = arith.constant 5 : index
    %164 = memref.load %arg3[%c5_93, %c5_94] : memref<12x8xf32, #tpu.memory_space<smem>>
    %165 = vector.broadcast %164 : f32 to vector<16x16xf32>
    %166 = arith.mulf %165, %97 : vector<16x16xf32>
    %167 = arith.addf %163, %166 : vector<16x16xf32>
    %c9_95 = arith.constant 9 : index
    %c5_96 = arith.constant 5 : index
    %168 = memref.load %arg3[%c9_95, %c5_96] : memref<12x8xf32, #tpu.memory_space<smem>>
    %169 = vector.broadcast %168 : f32 to vector<16x16xf32>
    %170 = arith.mulf %169, %100 : vector<16x16xf32>
    %171 = arith.addf %167, %170 : vector<16x16xf32>
    %172 = arith.addf %73, %171 : vector<16x16xf32>
    %c1_97 = arith.constant 1 : index
    %c6_98 = arith.constant 6 : index
    %173 = memref.load %arg3[%c1_97, %c6_98] : memref<12x8xf32, #tpu.memory_space<smem>>
    %174 = vector.broadcast %173 : f32 to vector<16x16xf32>
    %175 = arith.mulf %174, %99 : vector<16x16xf32>
    %c5_99 = arith.constant 5 : index
    %c6_100 = arith.constant 6 : index
    %176 = memref.load %arg3[%c5_99, %c6_100] : memref<12x8xf32, #tpu.memory_space<smem>>
    %177 = vector.broadcast %176 : f32 to vector<16x16xf32>
    %178 = arith.mulf %177, %97 : vector<16x16xf32>
    %179 = arith.addf %175, %178 : vector<16x16xf32>
    %c9_101 = arith.constant 9 : index
    %c6_102 = arith.constant 6 : index
    %180 = memref.load %arg3[%c9_101, %c6_102] : memref<12x8xf32, #tpu.memory_space<smem>>
    %181 = vector.broadcast %180 : f32 to vector<16x16xf32>
    %182 = arith.mulf %181, %100 : vector<16x16xf32>
    %183 = arith.addf %179, %182 : vector<16x16xf32>
    %184 = arith.addf %84, %183 : vector<16x16xf32>
    %c1_103 = arith.constant 1 : index
    %c7_104 = arith.constant 7 : index
    %185 = memref.load %arg3[%c1_103, %c7_104] : memref<12x8xf32, #tpu.memory_space<smem>>
    %186 = vector.broadcast %185 : f32 to vector<16x16xf32>
    %187 = arith.mulf %186, %99 : vector<16x16xf32>
    %c5_105 = arith.constant 5 : index
    %c7_106 = arith.constant 7 : index
    %188 = memref.load %arg3[%c5_105, %c7_106] : memref<12x8xf32, #tpu.memory_space<smem>>
    %189 = vector.broadcast %188 : f32 to vector<16x16xf32>
    %190 = arith.mulf %189, %97 : vector<16x16xf32>
    %191 = arith.addf %187, %190 : vector<16x16xf32>
    %c9_107 = arith.constant 9 : index
    %c7_108 = arith.constant 7 : index
    %192 = memref.load %arg3[%c9_107, %c7_108] : memref<12x8xf32, #tpu.memory_space<smem>>
    %193 = vector.broadcast %192 : f32 to vector<16x16xf32>
    %194 = arith.mulf %193, %100 : vector<16x16xf32>
    %195 = arith.addf %191, %194 : vector<16x16xf32>
    %196 = arith.addf %95, %195 : vector<16x16xf32>
    %c0_109 = arith.constant 0 : index
    %c2_110 = arith.constant 2 : index
    %c0_111 = arith.constant 0 : index
    %c0_112 = arith.constant 0 : index
    %197 = vector.load %arg2[%c0_109, %c2_110, %c0_111, %c0_112] : memref<1x4x16x16xf32, #tpu.memory_space<vmem>>, vector<1x1x16x16xf32>
    %198 = vector.shape_cast %197 : vector<1x1x16x16xf32> to vector<16x16xf32>
    %c8_113 = arith.constant 8 : index
    %c0_114 = arith.constant 0 : index
    %199 = vector.load %arg8[%c8_113, %c0_114] : memref<25x16xf32, #tpu.memory_space<vmem>>, vector<16x16xf32>
    tpu.vector_store %arg8[%c8_113, %c0_114], %198 {strides = array<i32>} : memref<25x16xf32, #tpu.memory_space<vmem>>, vector<16x16xf32>,
    %c7_115 = arith.constant 7 : index
    %c0_116 = arith.constant 0 : index
    %200 = vector.load %arg8[%c7_115, %c0_116] : memref<25x16xf32, #tpu.memory_space<vmem>>, vector<16x16xf32>
    %c9_117 = arith.constant 9 : index
    %c0_118 = arith.constant 0 : index
    %201 = vector.load %arg8[%c9_117, %c0_118] : memref<25x16xf32, #tpu.memory_space<vmem>>, vector<16x16xf32>
    %c2_119 = arith.constant 2 : index
    %c0_120 = arith.constant 0 : index
    %202 = memref.load %arg3[%c2_119, %c0_120] : memref<12x8xf32, #tpu.memory_space<smem>>
    %203 = vector.broadcast %202 : f32 to vector<16x16xf32>
    %204 = arith.mulf %203, %200 : vector<16x16xf32>
    %c6_121 = arith.constant 6 : index
    %c0_122 = arith.constant 0 : index
    %205 = memref.load %arg3[%c6_121, %c0_122] : memref<12x8xf32, #tpu.memory_space<smem>>
    %206 = vector.broadcast %205 : f32 to vector<16x16xf32>
    %207 = arith.mulf %206, %198 : vector<16x16xf32>
    %208 = arith.addf %204, %207 : vector<16x16xf32>
    %c10 = arith.constant 10 : index
    %c0_123 = arith.constant 0 : index
    %209 = memref.load %arg3[%c10, %c0_123] : memref<12x8xf32, #tpu.memory_space<smem>>
    %210 = vector.broadcast %209 : f32 to vector<16x16xf32>
    %211 = arith.mulf %210, %201 : vector<16x16xf32>
    %212 = arith.addf %208, %211 : vector<16x16xf32>
    %213 = arith.addf %112, %212 : vector<16x16xf32>
    %c2_124 = arith.constant 2 : index
    %c1_125 = arith.constant 1 : index
    %214 = memref.load %arg3[%c2_124, %c1_125] : memref<12x8xf32, #tpu.memory_space<smem>>
    %215 = vector.broadcast %214 : f32 to vector<16x16xf32>
    %216 = arith.mulf %215, %200 : vector<16x16xf32>
    %c6_126 = arith.constant 6 : index
    %c1_127 = arith.constant 1 : index
    %217 = memref.load %arg3[%c6_126, %c1_127] : memref<12x8xf32, #tpu.memory_space<smem>>
    %218 = vector.broadcast %217 : f32 to vector<16x16xf32>
    %219 = arith.mulf %218, %198 : vector<16x16xf32>
    %220 = arith.addf %216, %219 : vector<16x16xf32>
    %c10_128 = arith.constant 10 : index
    %c1_129 = arith.constant 1 : index
    %221 = memref.load %arg3[%c10_128, %c1_129] : memref<12x8xf32, #tpu.memory_space<smem>>
    %222 = vector.broadcast %221 : f32 to vector<16x16xf32>
    %223 = arith.mulf %222, %201 : vector<16x16xf32>
    %224 = arith.addf %220, %223 : vector<16x16xf32>
    %225 = arith.addf %124, %224 : vector<16x16xf32>
    %c2_130 = arith.constant 2 : index
    %c2_131 = arith.constant 2 : index
    %226 = memref.load %arg3[%c2_130, %c2_131] : memref<12x8xf32, #tpu.memory_space<smem>>
    %227 = vector.broadcast %226 : f32 to vector<16x16xf32>
    %228 = arith.mulf %227, %200 : vector<16x16xf32>
    %c6_132 = arith.constant 6 : index
    %c2_133 = arith.constant 2 : index
    %229 = memref.load %arg3[%c6_132, %c2_133] : memref<12x8xf32, #tpu.memory_space<smem>>
    %230 = vector.broadcast %229 : f32 to vector<16x16xf32>
    %231 = arith.mulf %230, %198 : vector<16x16xf32>
    %232 = arith.addf %228, %231 : vector<16x16xf32>
    %c10_134 = arith.constant 10 : index
    %c2_135 = arith.constant 2 : index
    %233 = memref.load %arg3[%c10_134, %c2_135] : memref<12x8xf32, #tpu.memory_space<smem>>
    %234 = vector.broadcast %233 : f32 to vector<16x16xf32>
    %235 = arith.mulf %234, %201 : vector<16x16xf32>
    %236 = arith.addf %232, %235 : vector<16x16xf32>
    %237 = arith.addf %136, %236 : vector<16x16xf32>
    %c2_136 = arith.constant 2 : index
    %c3_137 = arith.constant 3 : index
    %238 = memref.load %arg3[%c2_136, %c3_137] : memref<12x8xf32, #tpu.memory_space<smem>>
    %239 = vector.broadcast %238 : f32 to vector<16x16xf32>
    %240 = arith.mulf %239, %200 : vector<16x16xf32>
    %c6_138 = arith.constant 6 : index
    %c3_139 = arith.constant 3 : index
    %241 = memref.load %arg3[%c6_138, %c3_139] : memref<12x8xf32, #tpu.memory_space<smem>>
    %242 = vector.broadcast %241 : f32 to vector<16x16xf32>
    %243 = arith.mulf %242, %198 : vector<16x16xf32>
    %244 = arith.addf %240, %243 : vector<16x16xf32>
    %c10_140 = arith.constant 10 : index
    %c3_141 = arith.constant 3 : index
    %245 = memref.load %arg3[%c10_140, %c3_141] : memref<12x8xf32, #tpu.memory_space<smem>>
    %246 = vector.broadcast %245 : f32 to vector<16x16xf32>
    %247 = arith.mulf %246, %201 : vector<16x16xf32>
    %248 = arith.addf %244, %247 : vector<16x16xf32>
    %249 = arith.addf %148, %248 : vector<16x16xf32>
    %c2_142 = arith.constant 2 : index
    %c4_143 = arith.constant 4 : index
    %250 = memref.load %arg3[%c2_142, %c4_143] : memref<12x8xf32, #tpu.memory_space<smem>>
    %251 = vector.broadcast %250 : f32 to vector<16x16xf32>
    %252 = arith.mulf %251, %200 : vector<16x16xf32>
    %c6_144 = arith.constant 6 : index
    %c4_145 = arith.constant 4 : index
    %253 = memref.load %arg3[%c6_144, %c4_145] : memref<12x8xf32, #tpu.memory_space<smem>>
    %254 = vector.broadcast %253 : f32 to vector<16x16xf32>
    %255 = arith.mulf %254, %198 : vector<16x16xf32>
    %256 = arith.addf %252, %255 : vector<16x16xf32>
    %c10_146 = arith.constant 10 : index
    %c4_147 = arith.constant 4 : index
    %257 = memref.load %arg3[%c10_146, %c4_147] : memref<12x8xf32, #tpu.memory_space<smem>>
    %258 = vector.broadcast %257 : f32 to vector<16x16xf32>
    %259 = arith.mulf %258, %201 : vector<16x16xf32>
    %260 = arith.addf %256, %259 : vector<16x16xf32>
    %261 = arith.addf %160, %260 : vector<16x16xf32>
    %c2_148 = arith.constant 2 : index
    %c5_149 = arith.constant 5 : index
    %262 = memref.load %arg3[%c2_148, %c5_149] : memref<12x8xf32, #tpu.memory_space<smem>>
    %263 = vector.broadcast %262 : f32 to vector<16x16xf32>
    %264 = arith.mulf %263, %200 : vector<16x16xf32>
    %c6_150 = arith.constant 6 : index
    %c5_151 = arith.constant 5 : index
    %265 = memref.load %arg3[%c6_150, %c5_151] : memref<12x8xf32, #tpu.memory_space<smem>>
    %266 = vector.broadcast %265 : f32 to vector<16x16xf32>
    %267 = arith.mulf %266, %198 : vector<16x16xf32>
    %268 = arith.addf %264, %267 : vector<16x16xf32>
    %c10_152 = arith.constant 10 : index
    %c5_153 = arith.constant 5 : index
    %269 = memref.load %arg3[%c10_152, %c5_153] : memref<12x8xf32, #tpu.memory_space<smem>>
    %270 = vector.broadcast %269 : f32 to vector<16x16xf32>
    %271 = arith.mulf %270, %201 : vector<16x16xf32>
    %272 = arith.addf %268, %271 : vector<16x16xf32>
    %273 = arith.addf %172, %272 : vector<16x16xf32>
    %c2_154 = arith.constant 2 : index
    %c6_155 = arith.constant 6 : index
    %274 = memref.load %arg3[%c2_154, %c6_155] : memref<12x8xf32, #tpu.memory_space<smem>>
    %275 = vector.broadcast %274 : f32 to vector<16x16xf32>
    %276 = arith.mulf %275, %200 : vector<16x16xf32>
    %c6_156 = arith.constant 6 : index
    %c6_157 = arith.constant 6 : index
    %277 = memref.load %arg3[%c6_156, %c6_157] : memref<12x8xf32, #tpu.memory_space<smem>>
    %278 = vector.broadcast %277 : f32 to vector<16x16xf32>
    %279 = arith.mulf %278, %198 : vector<16x16xf32>
    %280 = arith.addf %276, %279 : vector<16x16xf32>
    %c10_158 = arith.constant 10 : index
    %c6_159 = arith.constant 6 : index
    %281 = memref.load %arg3[%c10_158, %c6_159] : memref<12x8xf32, #tpu.memory_space<smem>>
    %282 = vector.broadcast %281 : f32 to vector<16x16xf32>
    %283 = arith.mulf %282, %201 : vector<16x16xf32>
    %284 = arith.addf %280, %283 : vector<16x16xf32>
    %285 = arith.addf %184, %284 : vector<16x16xf32>
    %c2_160 = arith.constant 2 : index
    %c7_161 = arith.constant 7 : index
    %286 = memref.load %arg3[%c2_160, %c7_161] : memref<12x8xf32, #tpu.memory_space<smem>>
    %287 = vector.broadcast %286 : f32 to vector<16x16xf32>
    %288 = arith.mulf %287, %200 : vector<16x16xf32>
    %c6_162 = arith.constant 6 : index
    %c7_163 = arith.constant 7 : index
    %289 = memref.load %arg3[%c6_162, %c7_163] : memref<12x8xf32, #tpu.memory_space<smem>>
    %290 = vector.broadcast %289 : f32 to vector<16x16xf32>
    %291 = arith.mulf %290, %198 : vector<16x16xf32>
    %292 = arith.addf %288, %291 : vector<16x16xf32>
    %c10_164 = arith.constant 10 : index
    %c7_165 = arith.constant 7 : index
    %293 = memref.load %arg3[%c10_164, %c7_165] : memref<12x8xf32, #tpu.memory_space<smem>>
    %294 = vector.broadcast %293 : f32 to vector<16x16xf32>
    %295 = arith.mulf %294, %201 : vector<16x16xf32>
    %296 = arith.addf %292, %295 : vector<16x16xf32>
    %297 = arith.addf %196, %296 : vector<16x16xf32>
    %c0_166 = arith.constant 0 : index
    %c3_167 = arith.constant 3 : index
    %c0_168 = arith.constant 0 : index
    %c0_169 = arith.constant 0 : index
    %298 = vector.load %arg2[%c0_166, %c3_167, %c0_168, %c0_169] : memref<1x4x16x16xf32, #tpu.memory_space<vmem>>, vector<1x1x16x16xf32>
    %299 = vector.shape_cast %298 : vector<1x1x16x16xf32> to vector<16x16xf32>
    %c8_170 = arith.constant 8 : index
    %c0_171 = arith.constant 0 : index
    %300 = vector.load %arg8[%c8_170, %c0_171] : memref<25x16xf32, #tpu.memory_space<vmem>>, vector<16x16xf32>
    tpu.vector_store %arg8[%c8_170, %c0_171], %299 {strides = array<i32>} : memref<25x16xf32, #tpu.memory_space<vmem>>, vector<16x16xf32>,
    %c7_172 = arith.constant 7 : index
    %c0_173 = arith.constant 0 : index
    %301 = vector.load %arg8[%c7_172, %c0_173] : memref<25x16xf32, #tpu.memory_space<vmem>>, vector<16x16xf32>
    %c9_174 = arith.constant 9 : index
    %c0_175 = arith.constant 0 : index
    %302 = vector.load %arg8[%c9_174, %c0_175] : memref<25x16xf32, #tpu.memory_space<vmem>>, vector<16x16xf32>
    %c3_176 = arith.constant 3 : index
    %c0_177 = arith.constant 0 : index
    %303 = memref.load %arg3[%c3_176, %c0_177] : memref<12x8xf32, #tpu.memory_space<smem>>
    %304 = vector.broadcast %303 : f32 to vector<16x16xf32>
    %305 = arith.mulf %304, %301 : vector<16x16xf32>
    %c7_178 = arith.constant 7 : index
    %c0_179 = arith.constant 0 : index
    %306 = memref.load %arg3[%c7_178, %c0_179] : memref<12x8xf32, #tpu.memory_space<smem>>
    %307 = vector.broadcast %306 : f32 to vector<16x16xf32>
    %308 = arith.mulf %307, %299 : vector<16x16xf32>
    %309 = arith.addf %305, %308 : vector<16x16xf32>
    %c11 = arith.constant 11 : index
    %c0_180 = arith.constant 0 : index
    %310 = memref.load %arg3[%c11, %c0_180] : memref<12x8xf32, #tpu.memory_space<smem>>
    %311 = vector.broadcast %310 : f32 to vector<16x16xf32>
    %312 = arith.mulf %311, %302 : vector<16x16xf32>
    %313 = arith.addf %309, %312 : vector<16x16xf32>
    %314 = arith.addf %213, %313 : vector<16x16xf32>
    %c3_181 = arith.constant 3 : index
    %c1_182 = arith.constant 1 : index
    %315 = memref.load %arg3[%c3_181, %c1_182] : memref<12x8xf32, #tpu.memory_space<smem>>
    %316 = vector.broadcast %315 : f32 to vector<16x16xf32>
    %317 = arith.mulf %316, %301 : vector<16x16xf32>
    %c7_183 = arith.constant 7 : index
    %c1_184 = arith.constant 1 : index
    %318 = memref.load %arg3[%c7_183, %c1_184] : memref<12x8xf32, #tpu.memory_space<smem>>
    %319 = vector.broadcast %318 : f32 to vector<16x16xf32>
    %320 = arith.mulf %319, %299 : vector<16x16xf32>
    %321 = arith.addf %317, %320 : vector<16x16xf32>
    %c11_185 = arith.constant 11 : index
    %c1_186 = arith.constant 1 : index
    %322 = memref.load %arg3[%c11_185, %c1_186] : memref<12x8xf32, #tpu.memory_space<smem>>
    %323 = vector.broadcast %322 : f32 to vector<16x16xf32>
    %324 = arith.mulf %323, %302 : vector<16x16xf32>
    %325 = arith.addf %321, %324 : vector<16x16xf32>
    %326 = arith.addf %225, %325 : vector<16x16xf32>
    %c3_187 = arith.constant 3 : index
    %c2_188 = arith.constant 2 : index
    %327 = memref.load %arg3[%c3_187, %c2_188] : memref<12x8xf32, #tpu.memory_space<smem>>
    %328 = vector.broadcast %327 : f32 to vector<16x16xf32>
    %329 = arith.mulf %328, %301 : vector<16x16xf32>
    %c7_189 = arith.constant 7 : index
    %c2_190 = arith.constant 2 : index
    %330 = memref.load %arg3[%c7_189, %c2_190] : memref<12x8xf32, #tpu.memory_space<smem>>
    %331 = vector.broadcast %330 : f32 to vector<16x16xf32>
    %332 = arith.mulf %331, %299 : vector<16x16xf32>
    %333 = arith.addf %329, %332 : vector<16x16xf32>
    %c11_191 = arith.constant 11 : index
    %c2_192 = arith.constant 2 : index
    %334 = memref.load %arg3[%c11_191, %c2_192] : memref<12x8xf32, #tpu.memory_space<smem>>
    %335 = vector.broadcast %334 : f32 to vector<16x16xf32>
    %336 = arith.mulf %335, %302 : vector<16x16xf32>
    %337 = arith.addf %333, %336 : vector<16x16xf32>
    %338 = arith.addf %237, %337 : vector<16x16xf32>
    %c3_193 = arith.constant 3 : index
    %c3_194 = arith.constant 3 : index
    %339 = memref.load %arg3[%c3_193, %c3_194] : memref<12x8xf32, #tpu.memory_space<smem>>
    %340 = vector.broadcast %339 : f32 to vector<16x16xf32>
    %341 = arith.mulf %340, %301 : vector<16x16xf32>
    %c7_195 = arith.constant 7 : index
    %c3_196 = arith.constant 3 : index
    %342 = memref.load %arg3[%c7_195, %c3_196] : memref<12x8xf32, #tpu.memory_space<smem>>
    %343 = vector.broadcast %342 : f32 to vector<16x16xf32>
    %344 = arith.mulf %343, %299 : vector<16x16xf32>
    %345 = arith.addf %341, %344 : vector<16x16xf32>
    %c11_197 = arith.constant 11 : index
    %c3_198 = arith.constant 3 : index
    %346 = memref.load %arg3[%c11_197, %c3_198] : memref<12x8xf32, #tpu.memory_space<smem>>
    %347 = vector.broadcast %346 : f32 to vector<16x16xf32>
    %348 = arith.mulf %347, %302 : vector<16x16xf32>
    %349 = arith.addf %345, %348 : vector<16x16xf32>
    %350 = arith.addf %249, %349 : vector<16x16xf32>
    %c3_199 = arith.constant 3 : index
    %c4_200 = arith.constant 4 : index
    %351 = memref.load %arg3[%c3_199, %c4_200] : memref<12x8xf32, #tpu.memory_space<smem>>
    %352 = vector.broadcast %351 : f32 to vector<16x16xf32>
    %353 = arith.mulf %352, %301 : vector<16x16xf32>
    %c7_201 = arith.constant 7 : index
    %c4_202 = arith.constant 4 : index
    %354 = memref.load %arg3[%c7_201, %c4_202] : memref<12x8xf32, #tpu.memory_space<smem>>
    %355 = vector.broadcast %354 : f32 to vector<16x16xf32>
    %356 = arith.mulf %355, %299 : vector<16x16xf32>
    %357 = arith.addf %353, %356 : vector<16x16xf32>
    %c11_203 = arith.constant 11 : index
    %c4_204 = arith.constant 4 : index
    %358 = memref.load %arg3[%c11_203, %c4_204] : memref<12x8xf32, #tpu.memory_space<smem>>
    %359 = vector.broadcast %358 : f32 to vector<16x16xf32>
    %360 = arith.mulf %359, %302 : vector<16x16xf32>
    %361 = arith.addf %357, %360 : vector<16x16xf32>
    %362 = arith.addf %261, %361 : vector<16x16xf32>
    %c3_205 = arith.constant 3 : index
    %c5_206 = arith.constant 5 : index
    %363 = memref.load %arg3[%c3_205, %c5_206] : memref<12x8xf32, #tpu.memory_space<smem>>
    %364 = vector.broadcast %363 : f32 to vector<16x16xf32>
    %365 = arith.mulf %364, %301 : vector<16x16xf32>
    %c7_207 = arith.constant 7 : index
    %c5_208 = arith.constant 5 : index
    %366 = memref.load %arg3[%c7_207, %c5_208] : memref<12x8xf32, #tpu.memory_space<smem>>
    %367 = vector.broadcast %366 : f32 to vector<16x16xf32>
    %368 = arith.mulf %367, %299 : vector<16x16xf32>
    %369 = arith.addf %365, %368 : vector<16x16xf32>
    %c11_209 = arith.constant 11 : index
    %c5_210 = arith.constant 5 : index
    %370 = memref.load %arg3[%c11_209, %c5_210] : memref<12x8xf32, #tpu.memory_space<smem>>
    %371 = vector.broadcast %370 : f32 to vector<16x16xf32>
    %372 = arith.mulf %371, %302 : vector<16x16xf32>
    %373 = arith.addf %369, %372 : vector<16x16xf32>
    %374 = arith.addf %273, %373 : vector<16x16xf32>
    %c3_211 = arith.constant 3 : index
    %c6_212 = arith.constant 6 : index
    %375 = memref.load %arg3[%c3_211, %c6_212] : memref<12x8xf32, #tpu.memory_space<smem>>
    %376 = vector.broadcast %375 : f32 to vector<16x16xf32>
    %377 = arith.mulf %376, %301 : vector<16x16xf32>
    %c7_213 = arith.constant 7 : index
    %c6_214 = arith.constant 6 : index
    %378 = memref.load %arg3[%c7_213, %c6_214] : memref<12x8xf32, #tpu.memory_space<smem>>
    %379 = vector.broadcast %378 : f32 to vector<16x16xf32>
    %380 = arith.mulf %379, %299 : vector<16x16xf32>
    %381 = arith.addf %377, %380 : vector<16x16xf32>
    %c11_215 = arith.constant 11 : index
    %c6_216 = arith.constant 6 : index
    %382 = memref.load %arg3[%c11_215, %c6_216] : memref<12x8xf32, #tpu.memory_space<smem>>
    %383 = vector.broadcast %382 : f32 to vector<16x16xf32>
    %384 = arith.mulf %383, %302 : vector<16x16xf32>
    %385 = arith.addf %381, %384 : vector<16x16xf32>
    %386 = arith.addf %285, %385 : vector<16x16xf32>
    %c3_217 = arith.constant 3 : index
    %c7_218 = arith.constant 7 : index
    %387 = memref.load %arg3[%c3_217, %c7_218] : memref<12x8xf32, #tpu.memory_space<smem>>
    %388 = vector.broadcast %387 : f32 to vector<16x16xf32>
    %389 = arith.mulf %388, %301 : vector<16x16xf32>
    %c7_219 = arith.constant 7 : index
    %c7_220 = arith.constant 7 : index
    %390 = memref.load %arg3[%c7_219, %c7_220] : memref<12x8xf32, #tpu.memory_space<smem>>
    %391 = vector.broadcast %390 : f32 to vector<16x16xf32>
    %392 = arith.mulf %391, %299 : vector<16x16xf32>
    %393 = arith.addf %389, %392 : vector<16x16xf32>
    %c11_221 = arith.constant 11 : index
    %c7_222 = arith.constant 7 : index
    %394 = memref.load %arg3[%c11_221, %c7_222] : memref<12x8xf32, #tpu.memory_space<smem>>
    %395 = vector.broadcast %394 : f32 to vector<16x16xf32>
    %396 = arith.mulf %395, %302 : vector<16x16xf32>
    %397 = arith.addf %393, %396 : vector<16x16xf32>
    %398 = arith.addf %297, %397 : vector<16x16xf32>
    %c0_223 = arith.constant 0 : index
    %c0_224 = arith.constant 0 : index
    %399 = memref.load %arg4[%c0_223, %c0_224] : memref<1x8xf32, #tpu.memory_space<smem>>
    %400 = vector.broadcast %399 : f32 to vector<16x16xf32>
    %401 = arith.addf %314, %400 : vector<16x16xf32>
    %c8_225 = arith.constant 8 : index
    %c0_226 = arith.constant 0 : index
    %402 = vector.load %arg8[%c8_225, %c0_226] : memref<25x16xf32, #tpu.memory_space<vmem>>, vector<16x16xf32>
    tpu.vector_store %arg8[%c8_225, %c0_226], %401 {strides = array<i32>} : memref<25x16xf32, #tpu.memory_space<vmem>>, vector<16x16xf32>,
    %c1_227 = arith.constant 1 : index
    %c0_228 = arith.constant 0 : index
    %403 = memref.load %arg5[%c1_227, %c0_228] : memref<3x8xf32, #tpu.memory_space<smem>>
    %404 = vector.broadcast %403 : f32 to vector<16x16xf32>
    %405 = arith.mulf %404, %401 : vector<16x16xf32>
    %c0_229 = arith.constant 0 : index
    %c0_230 = arith.constant 0 : index
    %406 = memref.load %arg5[%c0_229, %c0_230] : memref<3x8xf32, #tpu.memory_space<smem>>
    %c7_231 = arith.constant 7 : index
    %c0_232 = arith.constant 0 : index
    %407 = vector.load %arg8[%c7_231, %c0_232] : memref<25x16xf32, #tpu.memory_space<vmem>>, vector<16x16xf32>
    %408 = vector.broadcast %406 : f32 to vector<16x16xf32>
    %409 = arith.mulf %408, %407 : vector<16x16xf32>
    %410 = arith.addf %405, %409 : vector<16x16xf32>
    %c2_233 = arith.constant 2 : index
    %c0_234 = arith.constant 0 : index
    %411 = memref.load %arg5[%c2_233, %c0_234] : memref<3x8xf32, #tpu.memory_space<smem>>
    %c9_235 = arith.constant 9 : index
    %c0_236 = arith.constant 0 : index
    %412 = vector.load %arg8[%c9_235, %c0_236] : memref<25x16xf32, #tpu.memory_space<vmem>>, vector<16x16xf32>
    %413 = vector.broadcast %411 : f32 to vector<16x16xf32>
    %414 = arith.mulf %413, %412 : vector<16x16xf32>
    %415 = arith.addf %410, %414 : vector<16x16xf32>
    %c0_237 = arith.constant 0 : index
    %c0_238 = arith.constant 0 : index
    %416 = memref.load %arg6[%c0_237, %c0_238] : memref<1x8xf32, #tpu.memory_space<smem>>
    %417 = vector.broadcast %416 : f32 to vector<16x16xf32>
    %418 = arith.addf %415, %417 : vector<16x16xf32>
    %c0_239 = arith.constant 0 : index
    %c1_240 = arith.constant 1 : index
    %419 = memref.load %arg4[%c0_239, %c1_240] : memref<1x8xf32, #tpu.memory_space<smem>>
    %420 = vector.broadcast %419 : f32 to vector<16x16xf32>
    %421 = arith.addf %326, %420 : vector<16x16xf32>
    %c8_241 = arith.constant 8 : index
    %c0_242 = arith.constant 0 : index
    %422 = vector.load %arg8[%c8_241, %c0_242] : memref<25x16xf32, #tpu.memory_space<vmem>>, vector<16x16xf32>
    tpu.vector_store %arg8[%c8_241, %c0_242], %421 {strides = array<i32>} : memref<25x16xf32, #tpu.memory_space<vmem>>, vector<16x16xf32>,
    %c1_243 = arith.constant 1 : index
    %c1_244 = arith.constant 1 : index
    %423 = memref.load %arg5[%c1_243, %c1_244] : memref<3x8xf32, #tpu.memory_space<smem>>
    %424 = vector.broadcast %423 : f32 to vector<16x16xf32>
    %425 = arith.mulf %424, %421 : vector<16x16xf32>
    %c0_245 = arith.constant 0 : index
    %c1_246 = arith.constant 1 : index
    %426 = memref.load %arg5[%c0_245, %c1_246] : memref<3x8xf32, #tpu.memory_space<smem>>
    %c7_247 = arith.constant 7 : index
    %c0_248 = arith.constant 0 : index
    %427 = vector.load %arg8[%c7_247, %c0_248] : memref<25x16xf32, #tpu.memory_space<vmem>>, vector<16x16xf32>
    %428 = vector.broadcast %426 : f32 to vector<16x16xf32>
    %429 = arith.mulf %428, %427 : vector<16x16xf32>
    %430 = arith.addf %425, %429 : vector<16x16xf32>
    %c2_249 = arith.constant 2 : index
    %c1_250 = arith.constant 1 : index
    %431 = memref.load %arg5[%c2_249, %c1_250] : memref<3x8xf32, #tpu.memory_space<smem>>
    %c9_251 = arith.constant 9 : index
    %c0_252 = arith.constant 0 : index
    %432 = vector.load %arg8[%c9_251, %c0_252] : memref<25x16xf32, #tpu.memory_space<vmem>>, vector<16x16xf32>
    %433 = vector.broadcast %431 : f32 to vector<16x16xf32>
    %434 = arith.mulf %433, %432 : vector<16x16xf32>
    %435 = arith.addf %430, %434 : vector<16x16xf32>
    %c0_253 = arith.constant 0 : index
    %c1_254 = arith.constant 1 : index
    %436 = memref.load %arg6[%c0_253, %c1_254] : memref<1x8xf32, #tpu.memory_space<smem>>
    %437 = vector.broadcast %436 : f32 to vector<16x16xf32>
    %438 = arith.addf %435, %437 : vector<16x16xf32>
    %c0_255 = arith.constant 0 : index
    %c2_256 = arith.constant 2 : index
    %439 = memref.load %arg4[%c0_255, %c2_256] : memref<1x8xf32, #tpu.memory_space<smem>>
    %440 = vector.broadcast %439 : f32 to vector<16x16xf32>
    %441 = arith.addf %338, %440 : vector<16x16xf32>
    %c8_257 = arith.constant 8 : index
    %c0_258 = arith.constant 0 : index
    %442 = vector.load %arg8[%c8_257, %c0_258] : memref<25x16xf32, #tpu.memory_space<vmem>>, vector<16x16xf32>
    tpu.vector_store %arg8[%c8_257, %c0_258], %441 {strides = array<i32>} : memref<25x16xf32, #tpu.memory_space<vmem>>, vector<16x16xf32>,
    %c1_259 = arith.constant 1 : index
    %c2_260 = arith.constant 2 : index
    %443 = memref.load %arg5[%c1_259, %c2_260] : memref<3x8xf32, #tpu.memory_space<smem>>
    %444 = vector.broadcast %443 : f32 to vector<16x16xf32>
    %445 = arith.mulf %444, %441 : vector<16x16xf32>
    %c0_261 = arith.constant 0 : index
    %c2_262 = arith.constant 2 : index
    %446 = memref.load %arg5[%c0_261, %c2_262] : memref<3x8xf32, #tpu.memory_space<smem>>
    %c7_263 = arith.constant 7 : index
    %c0_264 = arith.constant 0 : index
    %447 = vector.load %arg8[%c7_263, %c0_264] : memref<25x16xf32, #tpu.memory_space<vmem>>, vector<16x16xf32>
    %448 = vector.broadcast %446 : f32 to vector<16x16xf32>
    %449 = arith.mulf %448, %447 : vector<16x16xf32>
    %450 = arith.addf %445, %449 : vector<16x16xf32>
    %c2_265 = arith.constant 2 : index
    %c2_266 = arith.constant 2 : index
    %451 = memref.load %arg5[%c2_265, %c2_266] : memref<3x8xf32, #tpu.memory_space<smem>>
    %c9_267 = arith.constant 9 : index
    %c0_268 = arith.constant 0 : index
    %452 = vector.load %arg8[%c9_267, %c0_268] : memref<25x16xf32, #tpu.memory_space<vmem>>, vector<16x16xf32>
    %453 = vector.broadcast %451 : f32 to vector<16x16xf32>
    %454 = arith.mulf %453, %452 : vector<16x16xf32>
    %455 = arith.addf %450, %454 : vector<16x16xf32>
    %c0_269 = arith.constant 0 : index
    %c2_270 = arith.constant 2 : index
    %456 = memref.load %arg6[%c0_269, %c2_270] : memref<1x8xf32, #tpu.memory_space<smem>>
    %457 = vector.broadcast %456 : f32 to vector<16x16xf32>
    %458 = arith.addf %455, %457 : vector<16x16xf32>
    %c0_271 = arith.constant 0 : index
    %c3_272 = arith.constant 3 : index
    %459 = memref.load %arg4[%c0_271, %c3_272] : memref<1x8xf32, #tpu.memory_space<smem>>
    %460 = vector.broadcast %459 : f32 to vector<16x16xf32>
    %461 = arith.addf %350, %460 : vector<16x16xf32>
    %c8_273 = arith.constant 8 : index
    %c0_274 = arith.constant 0 : index
    %462 = vector.load %arg8[%c8_273, %c0_274] : memref<25x16xf32, #tpu.memory_space<vmem>>, vector<16x16xf32>
    tpu.vector_store %arg8[%c8_273, %c0_274], %461 {strides = array<i32>} : memref<25x16xf32, #tpu.memory_space<vmem>>, vector<16x16xf32>,
    %c1_275 = arith.constant 1 : index
    %c3_276 = arith.constant 3 : index
    %463 = memref.load %arg5[%c1_275, %c3_276] : memref<3x8xf32, #tpu.memory_space<smem>>
    %464 = vector.broadcast %463 : f32 to vector<16x16xf32>
    %465 = arith.mulf %464, %461 : vector<16x16xf32>
    %c0_277 = arith.constant 0 : index
    %c3_278 = arith.constant 3 : index
    %466 = memref.load %arg5[%c0_277, %c3_278] : memref<3x8xf32, #tpu.memory_space<smem>>
    %c7_279 = arith.constant 7 : index
    %c0_280 = arith.constant 0 : index
    %467 = vector.load %arg8[%c7_279, %c0_280] : memref<25x16xf32, #tpu.memory_space<vmem>>, vector<16x16xf32>
    %468 = vector.broadcast %466 : f32 to vector<16x16xf32>
    %469 = arith.mulf %468, %467 : vector<16x16xf32>
    %470 = arith.addf %465, %469 : vector<16x16xf32>
    %c2_281 = arith.constant 2 : index
    %c3_282 = arith.constant 3 : index
    %471 = memref.load %arg5[%c2_281, %c3_282] : memref<3x8xf32, #tpu.memory_space<smem>>
    %c9_283 = arith.constant 9 : index
    %c0_284 = arith.constant 0 : index
    %472 = vector.load %arg8[%c9_283, %c0_284] : memref<25x16xf32, #tpu.memory_space<vmem>>, vector<16x16xf32>
    %473 = vector.broadcast %471 : f32 to vector<16x16xf32>
    %474 = arith.mulf %473, %472 : vector<16x16xf32>
    %475 = arith.addf %470, %474 : vector<16x16xf32>
    %c0_285 = arith.constant 0 : index
    %c3_286 = arith.constant 3 : index
    %476 = memref.load %arg6[%c0_285, %c3_286] : memref<1x8xf32, #tpu.memory_space<smem>>
    %477 = vector.broadcast %476 : f32 to vector<16x16xf32>
    %478 = arith.addf %475, %477 : vector<16x16xf32>
    %c0_287 = arith.constant 0 : index
    %c4_288 = arith.constant 4 : index
    %479 = memref.load %arg4[%c0_287, %c4_288] : memref<1x8xf32, #tpu.memory_space<smem>>
    %480 = vector.broadcast %479 : f32 to vector<16x16xf32>
    %481 = arith.addf %362, %480 : vector<16x16xf32>
    %c8_289 = arith.constant 8 : index
    %c0_290 = arith.constant 0 : index
    %482 = vector.load %arg8[%c8_289, %c0_290] : memref<25x16xf32, #tpu.memory_space<vmem>>, vector<16x16xf32>
    tpu.vector_store %arg8[%c8_289, %c0_290], %481 {strides = array<i32>} : memref<25x16xf32, #tpu.memory_space<vmem>>, vector<16x16xf32>,
    %c1_291 = arith.constant 1 : index
    %c4_292 = arith.constant 4 : index
    %483 = memref.load %arg5[%c1_291, %c4_292] : memref<3x8xf32, #tpu.memory_space<smem>>
    %484 = vector.broadcast %483 : f32 to vector<16x16xf32>
    %485 = arith.mulf %484, %481 : vector<16x16xf32>
    %c0_293 = arith.constant 0 : index
    %c4_294 = arith.constant 4 : index
    %486 = memref.load %arg5[%c0_293, %c4_294] : memref<3x8xf32, #tpu.memory_space<smem>>
    %c7_295 = arith.constant 7 : index
    %c0_296 = arith.constant 0 : index
    %487 = vector.load %arg8[%c7_295, %c0_296] : memref<25x16xf32, #tpu.memory_space<vmem>>, vector<16x16xf32>
    %488 = vector.broadcast %486 : f32 to vector<16x16xf32>
    %489 = arith.mulf %488, %487 : vector<16x16xf32>
    %490 = arith.addf %485, %489 : vector<16x16xf32>
    %c2_297 = arith.constant 2 : index
    %c4_298 = arith.constant 4 : index
    %491 = memref.load %arg5[%c2_297, %c4_298] : memref<3x8xf32, #tpu.memory_space<smem>>
    %c9_299 = arith.constant 9 : index
    %c0_300 = arith.constant 0 : index
    %492 = vector.load %arg8[%c9_299, %c0_300] : memref<25x16xf32, #tpu.memory_space<vmem>>, vector<16x16xf32>
    %493 = vector.broadcast %491 : f32 to vector<16x16xf32>
    %494 = arith.mulf %493, %492 : vector<16x16xf32>
    %495 = arith.addf %490, %494 : vector<16x16xf32>
    %c0_301 = arith.constant 0 : index
    %c4_302 = arith.constant 4 : index
    %496 = memref.load %arg6[%c0_301, %c4_302] : memref<1x8xf32, #tpu.memory_space<smem>>
    %497 = vector.broadcast %496 : f32 to vector<16x16xf32>
    %498 = arith.addf %495, %497 : vector<16x16xf32>
    %c0_303 = arith.constant 0 : index
    %c5_304 = arith.constant 5 : index
    %499 = memref.load %arg4[%c0_303, %c5_304] : memref<1x8xf32, #tpu.memory_space<smem>>
    %500 = vector.broadcast %499 : f32 to vector<16x16xf32>
    %501 = arith.addf %374, %500 : vector<16x16xf32>
    %c8_305 = arith.constant 8 : index
    %c0_306 = arith.constant 0 : index
    %502 = vector.load %arg8[%c8_305, %c0_306] : memref<25x16xf32, #tpu.memory_space<vmem>>, vector<16x16xf32>
    tpu.vector_store %arg8[%c8_305, %c0_306], %501 {strides = array<i32>} : memref<25x16xf32, #tpu.memory_space<vmem>>, vector<16x16xf32>,
    %c1_307 = arith.constant 1 : index
    %c5_308 = arith.constant 5 : index
    %503 = memref.load %arg5[%c1_307, %c5_308] : memref<3x8xf32, #tpu.memory_space<smem>>
    %504 = vector.broadcast %503 : f32 to vector<16x16xf32>
    %505 = arith.mulf %504, %501 : vector<16x16xf32>
    %c0_309 = arith.constant 0 : index
    %c5_310 = arith.constant 5 : index
    %506 = memref.load %arg5[%c0_309, %c5_310] : memref<3x8xf32, #tpu.memory_space<smem>>
    %c7_311 = arith.constant 7 : index
    %c0_312 = arith.constant 0 : index
    %507 = vector.load %arg8[%c7_311, %c0_312] : memref<25x16xf32, #tpu.memory_space<vmem>>, vector<16x16xf32>
    %508 = vector.broadcast %506 : f32 to vector<16x16xf32>
    %509 = arith.mulf %508, %507 : vector<16x16xf32>
    %510 = arith.addf %505, %509 : vector<16x16xf32>
    %c2_313 = arith.constant 2 : index
    %c5_314 = arith.constant 5 : index
    %511 = memref.load %arg5[%c2_313, %c5_314] : memref<3x8xf32, #tpu.memory_space<smem>>
    %c9_315 = arith.constant 9 : index
    %c0_316 = arith.constant 0 : index
    %512 = vector.load %arg8[%c9_315, %c0_316] : memref<25x16xf32, #tpu.memory_space<vmem>>, vector<16x16xf32>
    %513 = vector.broadcast %511 : f32 to vector<16x16xf32>
    %514 = arith.mulf %513, %512 : vector<16x16xf32>
    %515 = arith.addf %510, %514 : vector<16x16xf32>
    %c0_317 = arith.constant 0 : index
    %c5_318 = arith.constant 5 : index
    %516 = memref.load %arg6[%c0_317, %c5_318] : memref<1x8xf32, #tpu.memory_space<smem>>
    %517 = vector.broadcast %516 : f32 to vector<16x16xf32>
    %518 = arith.addf %515, %517 : vector<16x16xf32>
    %c0_319 = arith.constant 0 : index
    %c6_320 = arith.constant 6 : index
    %519 = memref.load %arg4[%c0_319, %c6_320] : memref<1x8xf32, #tpu.memory_space<smem>>
    %520 = vector.broadcast %519 : f32 to vector<16x16xf32>
    %521 = arith.addf %386, %520 : vector<16x16xf32>
    %c8_321 = arith.constant 8 : index
    %c0_322 = arith.constant 0 : index
    %522 = vector.load %arg8[%c8_321, %c0_322] : memref<25x16xf32, #tpu.memory_space<vmem>>, vector<16x16xf32>
    tpu.vector_store %arg8[%c8_321, %c0_322], %521 {strides = array<i32>} : memref<25x16xf32, #tpu.memory_space<vmem>>, vector<16x16xf32>,
    %c1_323 = arith.constant 1 : index
    %c6_324 = arith.constant 6 : index
    %523 = memref.load %arg5[%c1_323, %c6_324] : memref<3x8xf32, #tpu.memory_space<smem>>
    %524 = vector.broadcast %523 : f32 to vector<16x16xf32>
    %525 = arith.mulf %524, %521 : vector<16x16xf32>
    %c0_325 = arith.constant 0 : index
    %c6_326 = arith.constant 6 : index
    %526 = memref.load %arg5[%c0_325, %c6_326] : memref<3x8xf32, #tpu.memory_space<smem>>
    %c7_327 = arith.constant 7 : index
    %c0_328 = arith.constant 0 : index
    %527 = vector.load %arg8[%c7_327, %c0_328] : memref<25x16xf32, #tpu.memory_space<vmem>>, vector<16x16xf32>
    %528 = vector.broadcast %526 : f32 to vector<16x16xf32>
    %529 = arith.mulf %528, %527 : vector<16x16xf32>
    %530 = arith.addf %525, %529 : vector<16x16xf32>
    %c2_329 = arith.constant 2 : index
    %c6_330 = arith.constant 6 : index
    %531 = memref.load %arg5[%c2_329, %c6_330] : memref<3x8xf32, #tpu.memory_space<smem>>
    %c9_331 = arith.constant 9 : index
    %c0_332 = arith.constant 0 : index
    %532 = vector.load %arg8[%c9_331, %c0_332] : memref<25x16xf32, #tpu.memory_space<vmem>>, vector<16x16xf32>
    %533 = vector.broadcast %531 : f32 to vector<16x16xf32>
    %534 = arith.mulf %533, %532 : vector<16x16xf32>
    %535 = arith.addf %530, %534 : vector<16x16xf32>
    %c0_333 = arith.constant 0 : index
    %c6_334 = arith.constant 6 : index
    %536 = memref.load %arg6[%c0_333, %c6_334] : memref<1x8xf32, #tpu.memory_space<smem>>
    %537 = vector.broadcast %536 : f32 to vector<16x16xf32>
    %538 = arith.addf %535, %537 : vector<16x16xf32>
    %c0_335 = arith.constant 0 : index
    %c7_336 = arith.constant 7 : index
    %539 = memref.load %arg4[%c0_335, %c7_336] : memref<1x8xf32, #tpu.memory_space<smem>>
    %540 = vector.broadcast %539 : f32 to vector<16x16xf32>
    %541 = arith.addf %398, %540 : vector<16x16xf32>
    %c8_337 = arith.constant 8 : index
    %c0_338 = arith.constant 0 : index
    %542 = vector.load %arg8[%c8_337, %c0_338] : memref<25x16xf32, #tpu.memory_space<vmem>>, vector<16x16xf32>
    tpu.vector_store %arg8[%c8_337, %c0_338], %541 {strides = array<i32>} : memref<25x16xf32, #tpu.memory_space<vmem>>, vector<16x16xf32>,
    %c1_339 = arith.constant 1 : index
    %c7_340 = arith.constant 7 : index
    %543 = memref.load %arg5[%c1_339, %c7_340] : memref<3x8xf32, #tpu.memory_space<smem>>
    %544 = vector.broadcast %543 : f32 to vector<16x16xf32>
    %545 = arith.mulf %544, %541 : vector<16x16xf32>
    %c0_341 = arith.constant 0 : index
    %c7_342 = arith.constant 7 : index
    %546 = memref.load %arg5[%c0_341, %c7_342] : memref<3x8xf32, #tpu.memory_space<smem>>
    %c7_343 = arith.constant 7 : index
    %c0_344 = arith.constant 0 : index
    %547 = vector.load %arg8[%c7_343, %c0_344] : memref<25x16xf32, #tpu.memory_space<vmem>>, vector<16x16xf32>
    %548 = vector.broadcast %546 : f32 to vector<16x16xf32>
    %549 = arith.mulf %548, %547 : vector<16x16xf32>
    %550 = arith.addf %545, %549 : vector<16x16xf32>
    %c2_345 = arith.constant 2 : index
    %c7_346 = arith.constant 7 : index
    %551 = memref.load %arg5[%c2_345, %c7_346] : memref<3x8xf32, #tpu.memory_space<smem>>
    %c9_347 = arith.constant 9 : index
    %c0_348 = arith.constant 0 : index
    %552 = vector.load %arg8[%c9_347, %c0_348] : memref<25x16xf32, #tpu.memory_space<vmem>>, vector<16x16xf32>
    %553 = vector.broadcast %551 : f32 to vector<16x16xf32>
    %554 = arith.mulf %553, %552 : vector<16x16xf32>
    %555 = arith.addf %550, %554 : vector<16x16xf32>
    %c0_349 = arith.constant 0 : index
    %c7_350 = arith.constant 7 : index
    %556 = memref.load %arg6[%c0_349, %c7_350] : memref<1x8xf32, #tpu.memory_space<smem>>
    %557 = vector.broadcast %556 : f32 to vector<16x16xf32>
    %558 = arith.addf %555, %557 : vector<16x16xf32>
    %cst_351 = arith.constant 0.000000e+00 : f32
    %559 = vector.broadcast %cst_351 : f32 to vector<16x16xf32>
    %560 = arith.cmpf ogt, %418, %559 : vector<16x16xf32>
    %cst_352 = arith.constant 0.000000e+00 : f32
    %561 = vector.broadcast %cst_352 : f32 to vector<16x16xf32>
    %562 = arith.minimumf %418, %561 : vector<16x16xf32>
    %563 = math.exp %562 : vector<16x16xf32>
    %cst_353 = arith.constant 1.000000e+00 : f32
    %564 = vector.broadcast %cst_353 : f32 to vector<16x16xf32>
    %565 = arith.subf %563, %564 : vector<16x16xf32>
    %566 = arith.select %560, %418, %565 : vector<16x16xi1>, vector<16x16xf32>
    %c8_354 = arith.constant 8 : index
    %c0_355 = arith.constant 0 : index
    %567 = vector.load %arg8[%c8_354, %c0_355] : memref<25x16xf32, #tpu.memory_space<vmem>>, vector<16x16xf32>
    tpu.vector_store %arg8[%c8_354, %c0_355], %566 {strides = array<i32>} : memref<25x16xf32, #tpu.memory_space<vmem>>, vector<16x16xf32>,
    %c8_356 = arith.constant 8 : index
    %c0_357 = arith.constant 0 : index
    %568 = tpu.strided_load %arg8[%c8_356, %c0_357] {strides = array<i32: 2, 1>} : memref<25x16xf32, #tpu.memory_space<vmem>>, vector<8x16xf32>
    %c9_358 = arith.constant 9 : index
    %c0_359 = arith.constant 0 : index
    %569 = tpu.strided_load %arg8[%c9_358, %c0_359] {strides = array<i32: 2, 1>} : memref<25x16xf32, #tpu.memory_space<vmem>>, vector<8x16xf32>
    %570 = arith.addf %568, %569 : vector<8x16xf32>
    %cst_360 = arith.constant 5.000000e-01 : f32
    %571 = vector.broadcast %cst_360 : f32 to vector<8x16xf32>
    %572 = arith.mulf %571, %570 : vector<8x16xf32>
    %573 = arith.truncf %572 : vector<8x16xf32> to vector<8x16xbf16>
    %c0_361 = arith.constant 0 : index
    %c0_362 = arith.constant 0 : index
    %c0_363 = arith.constant 0 : index
    %c0_364 = arith.constant 0 : index
    %574 = vector.load %arg7[%c0_361, %c0_362, %c0_363, %c0_364] : memref<1x8x8x16xbf16, #tpu.memory_space<vmem>>, vector<1x1x8x16xbf16>
    %575 = vector.shape_cast %574 : vector<1x1x8x16xbf16> to vector<8x16xbf16>
    %576 = vector.shape_cast %573 : vector<8x16xbf16> to vector<1x1x8x16xbf16>
    tpu.vector_store %arg7[%c0_361, %c0_362, %c0_363, %c0_364], %576 {strides = array<i32>} : memref<1x8x8x16xbf16, #tpu.memory_space<vmem>>, vector<1x1x8x16xbf16>,
    %cst_365 = arith.constant 0.000000e+00 : f32
    %577 = vector.broadcast %cst_365 : f32 to vector<16x16xf32>
    %578 = arith.cmpf ogt, %438, %577 : vector<16x16xf32>
    %cst_366 = arith.constant 0.000000e+00 : f32
    %579 = vector.broadcast %cst_366 : f32 to vector<16x16xf32>
    %580 = arith.minimumf %438, %579 : vector<16x16xf32>
    %581 = math.exp %580 : vector<16x16xf32>
    %cst_367 = arith.constant 1.000000e+00 : f32
    %582 = vector.broadcast %cst_367 : f32 to vector<16x16xf32>
    %583 = arith.subf %581, %582 : vector<16x16xf32>
    %584 = arith.select %578, %438, %583 : vector<16x16xi1>, vector<16x16xf32>
    %c8_368 = arith.constant 8 : index
    %c0_369 = arith.constant 0 : index
    %585 = vector.load %arg8[%c8_368, %c0_369] : memref<25x16xf32, #tpu.memory_space<vmem>>, vector<16x16xf32>
    tpu.vector_store %arg8[%c8_368, %c0_369], %584 {strides = array<i32>} : memref<25x16xf32, #tpu.memory_space<vmem>>, vector<16x16xf32>,
    %c8_370 = arith.constant 8 : index
    %c0_371 = arith.constant 0 : index
    %586 = tpu.strided_load %arg8[%c8_370, %c0_371] {strides = array<i32: 2, 1>} : memref<25x16xf32, #tpu.memory_space<vmem>>, vector<8x16xf32>
    %c9_372 = arith.constant 9 : index
    %c0_373 = arith.constant 0 : index
    %587 = tpu.strided_load %arg8[%c9_372, %c0_373] {strides = array<i32: 2, 1>} : memref<25x16xf32, #tpu.memory_space<vmem>>, vector<8x16xf32>
    %588 = arith.addf %586, %587 : vector<8x16xf32>
    %cst_374 = arith.constant 5.000000e-01 : f32
    %589 = vector.broadcast %cst_374 : f32 to vector<8x16xf32>
    %590 = arith.mulf %589, %588 : vector<8x16xf32>
    %591 = arith.truncf %590 : vector<8x16xf32> to vector<8x16xbf16>
    %c0_375 = arith.constant 0 : index
    %c1_376 = arith.constant 1 : index
    %c0_377 = arith.constant 0 : index
    %c0_378 = arith.constant 0 : index
    %592 = vector.load %arg7[%c0_375, %c1_376, %c0_377, %c0_378] : memref<1x8x8x16xbf16, #tpu.memory_space<vmem>>, vector<1x1x8x16xbf16>
    %593 = vector.shape_cast %592 : vector<1x1x8x16xbf16> to vector<8x16xbf16>
    %594 = vector.shape_cast %591 : vector<8x16xbf16> to vector<1x1x8x16xbf16>
    tpu.vector_store %arg7[%c0_375, %c1_376, %c0_377, %c0_378], %594 {strides = array<i32>} : memref<1x8x8x16xbf16, #tpu.memory_space<vmem>>, vector<1x1x8x16xbf16>,
    %cst_379 = arith.constant 0.000000e+00 : f32
    %595 = vector.broadcast %cst_379 : f32 to vector<16x16xf32>
    %596 = arith.cmpf ogt, %458, %595 : vector<16x16xf32>
    %cst_380 = arith.constant 0.000000e+00 : f32
    %597 = vector.broadcast %cst_380 : f32 to vector<16x16xf32>
    %598 = arith.minimumf %458, %597 : vector<16x16xf32>
    %599 = math.exp %598 : vector<16x16xf32>
    %cst_381 = arith.constant 1.000000e+00 : f32
    %600 = vector.broadcast %cst_381 : f32 to vector<16x16xf32>
    %601 = arith.subf %599, %600 : vector<16x16xf32>
    %602 = arith.select %596, %458, %601 : vector<16x16xi1>, vector<16x16xf32>
    %c8_382 = arith.constant 8 : index
    %c0_383 = arith.constant 0 : index
    %603 = vector.load %arg8[%c8_382, %c0_383] : memref<25x16xf32, #tpu.memory_space<vmem>>, vector<16x16xf32>
    tpu.vector_store %arg8[%c8_382, %c0_383], %602 {strides = array<i32>} : memref<25x16xf32, #tpu.memory_space<vmem>>, vector<16x16xf32>,
    %c8_384 = arith.constant 8 : index
    %c0_385 = arith.constant 0 : index
    %604 = tpu.strided_load %arg8[%c8_384, %c0_385] {strides = array<i32: 2, 1>} : memref<25x16xf32, #tpu.memory_space<vmem>>, vector<8x16xf32>
    %c9_386 = arith.constant 9 : index
    %c0_387 = arith.constant 0 : index
    %605 = tpu.strided_load %arg8[%c9_386, %c0_387] {strides = array<i32: 2, 1>} : memref<25x16xf32, #tpu.memory_space<vmem>>, vector<8x16xf32>
    %606 = arith.addf %604, %605 : vector<8x16xf32>
    %cst_388 = arith.constant 5.000000e-01 : f32
    %607 = vector.broadcast %cst_388 : f32 to vector<8x16xf32>
    %608 = arith.mulf %607, %606 : vector<8x16xf32>
    %609 = arith.truncf %608 : vector<8x16xf32> to vector<8x16xbf16>
    %c0_389 = arith.constant 0 : index
    %c2_390 = arith.constant 2 : index
    %c0_391 = arith.constant 0 : index
    %c0_392 = arith.constant 0 : index
    %610 = vector.load %arg7[%c0_389, %c2_390, %c0_391, %c0_392] : memref<1x8x8x16xbf16, #tpu.memory_space<vmem>>, vector<1x1x8x16xbf16>
    %611 = vector.shape_cast %610 : vector<1x1x8x16xbf16> to vector<8x16xbf16>
    %612 = vector.shape_cast %609 : vector<8x16xbf16> to vector<1x1x8x16xbf16>
    tpu.vector_store %arg7[%c0_389, %c2_390, %c0_391, %c0_392], %612 {strides = array<i32>} : memref<1x8x8x16xbf16, #tpu.memory_space<vmem>>, vector<1x1x8x16xbf16>,
    %cst_393 = arith.constant 0.000000e+00 : f32
    %613 = vector.broadcast %cst_393 : f32 to vector<16x16xf32>
    %614 = arith.cmpf ogt, %478, %613 : vector<16x16xf32>
    %cst_394 = arith.constant 0.000000e+00 : f32
    %615 = vector.broadcast %cst_394 : f32 to vector<16x16xf32>
    %616 = arith.minimumf %478, %615 : vector<16x16xf32>
    %617 = math.exp %616 : vector<16x16xf32>
    %cst_395 = arith.constant 1.000000e+00 : f32
    %618 = vector.broadcast %cst_395 : f32 to vector<16x16xf32>
    %619 = arith.subf %617, %618 : vector<16x16xf32>
    %620 = arith.select %614, %478, %619 : vector<16x16xi1>, vector<16x16xf32>
    %c8_396 = arith.constant 8 : index
    %c0_397 = arith.constant 0 : index
    %621 = vector.load %arg8[%c8_396, %c0_397] : memref<25x16xf32, #tpu.memory_space<vmem>>, vector<16x16xf32>
    tpu.vector_store %arg8[%c8_396, %c0_397], %620 {strides = array<i32>} : memref<25x16xf32, #tpu.memory_space<vmem>>, vector<16x16xf32>,
    %c8_398 = arith.constant 8 : index
    %c0_399 = arith.constant 0 : index
    %622 = tpu.strided_load %arg8[%c8_398, %c0_399] {strides = array<i32: 2, 1>} : memref<25x16xf32, #tpu.memory_space<vmem>>, vector<8x16xf32>
    %c9_400 = arith.constant 9 : index
    %c0_401 = arith.constant 0 : index
    %623 = tpu.strided_load %arg8[%c9_400, %c0_401] {strides = array<i32: 2, 1>} : memref<25x16xf32, #tpu.memory_space<vmem>>, vector<8x16xf32>
    %624 = arith.addf %622, %623 : vector<8x16xf32>
    %cst_402 = arith.constant 5.000000e-01 : f32
    %625 = vector.broadcast %cst_402 : f32 to vector<8x16xf32>
    %626 = arith.mulf %625, %624 : vector<8x16xf32>
    %627 = arith.truncf %626 : vector<8x16xf32> to vector<8x16xbf16>
    %c0_403 = arith.constant 0 : index
    %c3_404 = arith.constant 3 : index
    %c0_405 = arith.constant 0 : index
    %c0_406 = arith.constant 0 : index
    %628 = vector.load %arg7[%c0_403, %c3_404, %c0_405, %c0_406] : memref<1x8x8x16xbf16, #tpu.memory_space<vmem>>, vector<1x1x8x16xbf16>
    %629 = vector.shape_cast %628 : vector<1x1x8x16xbf16> to vector<8x16xbf16>
    %630 = vector.shape_cast %627 : vector<8x16xbf16> to vector<1x1x8x16xbf16>
    tpu.vector_store %arg7[%c0_403, %c3_404, %c0_405, %c0_406], %630 {strides = array<i32>} : memref<1x8x8x16xbf16, #tpu.memory_space<vmem>>, vector<1x1x8x16xbf16>,
    %cst_407 = arith.constant 0.000000e+00 : f32
    %631 = vector.broadcast %cst_407 : f32 to vector<16x16xf32>
    %632 = arith.cmpf ogt, %498, %631 : vector<16x16xf32>
    %cst_408 = arith.constant 0.000000e+00 : f32
    %633 = vector.broadcast %cst_408 : f32 to vector<16x16xf32>
    %634 = arith.minimumf %498, %633 : vector<16x16xf32>
    %635 = math.exp %634 : vector<16x16xf32>
    %cst_409 = arith.constant 1.000000e+00 : f32
    %636 = vector.broadcast %cst_409 : f32 to vector<16x16xf32>
    %637 = arith.subf %635, %636 : vector<16x16xf32>
    %638 = arith.select %632, %498, %637 : vector<16x16xi1>, vector<16x16xf32>
    %c8_410 = arith.constant 8 : index
    %c0_411 = arith.constant 0 : index
    %639 = vector.load %arg8[%c8_410, %c0_411] : memref<25x16xf32, #tpu.memory_space<vmem>>, vector<16x16xf32>
    tpu.vector_store %arg8[%c8_410, %c0_411], %638 {strides = array<i32>} : memref<25x16xf32, #tpu.memory_space<vmem>>, vector<16x16xf32>,
    %c8_412 = arith.constant 8 : index
    %c0_413 = arith.constant 0 : index
    %640 = tpu.strided_load %arg8[%c8_412, %c0_413] {strides = array<i32: 2, 1>} : memref<25x16xf32, #tpu.memory_space<vmem>>, vector<8x16xf32>
    %c9_414 = arith.constant 9 : index
    %c0_415 = arith.constant 0 : index
    %641 = tpu.strided_load %arg8[%c9_414, %c0_415] {strides = array<i32: 2, 1>} : memref<25x16xf32, #tpu.memory_space<vmem>>, vector<8x16xf32>
    %642 = arith.addf %640, %641 : vector<8x16xf32>
    %cst_416 = arith.constant 5.000000e-01 : f32
    %643 = vector.broadcast %cst_416 : f32 to vector<8x16xf32>
    %644 = arith.mulf %643, %642 : vector<8x16xf32>
    %645 = arith.truncf %644 : vector<8x16xf32> to vector<8x16xbf16>
    %c0_417 = arith.constant 0 : index
    %c4_418 = arith.constant 4 : index
    %c0_419 = arith.constant 0 : index
    %c0_420 = arith.constant 0 : index
    %646 = vector.load %arg7[%c0_417, %c4_418, %c0_419, %c0_420] : memref<1x8x8x16xbf16, #tpu.memory_space<vmem>>, vector<1x1x8x16xbf16>
    %647 = vector.shape_cast %646 : vector<1x1x8x16xbf16> to vector<8x16xbf16>
    %648 = vector.shape_cast %645 : vector<8x16xbf16> to vector<1x1x8x16xbf16>
    tpu.vector_store %arg7[%c0_417, %c4_418, %c0_419, %c0_420], %648 {strides = array<i32>} : memref<1x8x8x16xbf16, #tpu.memory_space<vmem>>, vector<1x1x8x16xbf16>,
    %cst_421 = arith.constant 0.000000e+00 : f32
    %649 = vector.broadcast %cst_421 : f32 to vector<16x16xf32>
    %650 = arith.cmpf ogt, %518, %649 : vector<16x16xf32>
    %cst_422 = arith.constant 0.000000e+00 : f32
    %651 = vector.broadcast %cst_422 : f32 to vector<16x16xf32>
    %652 = arith.minimumf %518, %651 : vector<16x16xf32>
    %653 = math.exp %652 : vector<16x16xf32>
    %cst_423 = arith.constant 1.000000e+00 : f32
    %654 = vector.broadcast %cst_423 : f32 to vector<16x16xf32>
    %655 = arith.subf %653, %654 : vector<16x16xf32>
    %656 = arith.select %650, %518, %655 : vector<16x16xi1>, vector<16x16xf32>
    %c8_424 = arith.constant 8 : index
    %c0_425 = arith.constant 0 : index
    %657 = vector.load %arg8[%c8_424, %c0_425] : memref<25x16xf32, #tpu.memory_space<vmem>>, vector<16x16xf32>
    tpu.vector_store %arg8[%c8_424, %c0_425], %656 {strides = array<i32>} : memref<25x16xf32, #tpu.memory_space<vmem>>, vector<16x16xf32>,
    %c8_426 = arith.constant 8 : index
    %c0_427 = arith.constant 0 : index
    %658 = tpu.strided_load %arg8[%c8_426, %c0_427] {strides = array<i32: 2, 1>} : memref<25x16xf32, #tpu.memory_space<vmem>>, vector<8x16xf32>
    %c9_428 = arith.constant 9 : index
    %c0_429 = arith.constant 0 : index
    %659 = tpu.strided_load %arg8[%c9_428, %c0_429] {strides = array<i32: 2, 1>} : memref<25x16xf32, #tpu.memory_space<vmem>>, vector<8x16xf32>
    %660 = arith.addf %658, %659 : vector<8x16xf32>
    %cst_430 = arith.constant 5.000000e-01 : f32
    %661 = vector.broadcast %cst_430 : f32 to vector<8x16xf32>
    %662 = arith.mulf %661, %660 : vector<8x16xf32>
    %663 = arith.truncf %662 : vector<8x16xf32> to vector<8x16xbf16>
    %c0_431 = arith.constant 0 : index
    %c5_432 = arith.constant 5 : index
    %c0_433 = arith.constant 0 : index
    %c0_434 = arith.constant 0 : index
    %664 = vector.load %arg7[%c0_431, %c5_432, %c0_433, %c0_434] : memref<1x8x8x16xbf16, #tpu.memory_space<vmem>>, vector<1x1x8x16xbf16>
    %665 = vector.shape_cast %664 : vector<1x1x8x16xbf16> to vector<8x16xbf16>
    %666 = vector.shape_cast %663 : vector<8x16xbf16> to vector<1x1x8x16xbf16>
    tpu.vector_store %arg7[%c0_431, %c5_432, %c0_433, %c0_434], %666 {strides = array<i32>} : memref<1x8x8x16xbf16, #tpu.memory_space<vmem>>, vector<1x1x8x16xbf16>,
    %cst_435 = arith.constant 0.000000e+00 : f32
    %667 = vector.broadcast %cst_435 : f32 to vector<16x16xf32>
    %668 = arith.cmpf ogt, %538, %667 : vector<16x16xf32>
    %cst_436 = arith.constant 0.000000e+00 : f32
    %669 = vector.broadcast %cst_436 : f32 to vector<16x16xf32>
    %670 = arith.minimumf %538, %669 : vector<16x16xf32>
    %671 = math.exp %670 : vector<16x16xf32>
    %cst_437 = arith.constant 1.000000e+00 : f32
    %672 = vector.broadcast %cst_437 : f32 to vector<16x16xf32>
    %673 = arith.subf %671, %672 : vector<16x16xf32>
    %674 = arith.select %668, %538, %673 : vector<16x16xi1>, vector<16x16xf32>
    %c8_438 = arith.constant 8 : index
    %c0_439 = arith.constant 0 : index
    %675 = vector.load %arg8[%c8_438, %c0_439] : memref<25x16xf32, #tpu.memory_space<vmem>>, vector<16x16xf32>
    tpu.vector_store %arg8[%c8_438, %c0_439], %674 {strides = array<i32>} : memref<25x16xf32, #tpu.memory_space<vmem>>, vector<16x16xf32>,
    %c8_440 = arith.constant 8 : index
    %c0_441 = arith.constant 0 : index
    %676 = tpu.strided_load %arg8[%c8_440, %c0_441] {strides = array<i32: 2, 1>} : memref<25x16xf32, #tpu.memory_space<vmem>>, vector<8x16xf32>
    %c9_442 = arith.constant 9 : index
    %c0_443 = arith.constant 0 : index
    %677 = tpu.strided_load %arg8[%c9_442, %c0_443] {strides = array<i32: 2, 1>} : memref<25x16xf32, #tpu.memory_space<vmem>>, vector<8x16xf32>
    %678 = arith.addf %676, %677 : vector<8x16xf32>
    %cst_444 = arith.constant 5.000000e-01 : f32
    %679 = vector.broadcast %cst_444 : f32 to vector<8x16xf32>
    %680 = arith.mulf %679, %678 : vector<8x16xf32>
    %681 = arith.truncf %680 : vector<8x16xf32> to vector<8x16xbf16>
    %c0_445 = arith.constant 0 : index
    %c6_446 = arith.constant 6 : index
    %c0_447 = arith.constant 0 : index
    %c0_448 = arith.constant 0 : index
    %682 = vector.load %arg7[%c0_445, %c6_446, %c0_447, %c0_448] : memref<1x8x8x16xbf16, #tpu.memory_space<vmem>>, vector<1x1x8x16xbf16>
    %683 = vector.shape_cast %682 : vector<1x1x8x16xbf16> to vector<8x16xbf16>
    %684 = vector.shape_cast %681 : vector<8x16xbf16> to vector<1x1x8x16xbf16>
    tpu.vector_store %arg7[%c0_445, %c6_446, %c0_447, %c0_448], %684 {strides = array<i32>} : memref<1x8x8x16xbf16, #tpu.memory_space<vmem>>, vector<1x1x8x16xbf16>,
    %cst_449 = arith.constant 0.000000e+00 : f32
    %685 = vector.broadcast %cst_449 : f32 to vector<16x16xf32>
    %686 = arith.cmpf ogt, %558, %685 : vector<16x16xf32>
    %cst_450 = arith.constant 0.000000e+00 : f32
    %687 = vector.broadcast %cst_450 : f32 to vector<16x16xf32>
    %688 = arith.minimumf %558, %687 : vector<16x16xf32>
    %689 = math.exp %688 : vector<16x16xf32>
    %cst_451 = arith.constant 1.000000e+00 : f32
    %690 = vector.broadcast %cst_451 : f32 to vector<16x16xf32>
    %691 = arith.subf %689, %690 : vector<16x16xf32>
    %692 = arith.select %686, %558, %691 : vector<16x16xi1>, vector<16x16xf32>
    %c8_452 = arith.constant 8 : index
    %c0_453 = arith.constant 0 : index
    %693 = vector.load %arg8[%c8_452, %c0_453] : memref<25x16xf32, #tpu.memory_space<vmem>>, vector<16x16xf32>
    tpu.vector_store %arg8[%c8_452, %c0_453], %692 {strides = array<i32>} : memref<25x16xf32, #tpu.memory_space<vmem>>, vector<16x16xf32>,
    %c8_454 = arith.constant 8 : index
    %c0_455 = arith.constant 0 : index
    %694 = tpu.strided_load %arg8[%c8_454, %c0_455] {strides = array<i32: 2, 1>} : memref<25x16xf32, #tpu.memory_space<vmem>>, vector<8x16xf32>
    %c9_456 = arith.constant 9 : index
    %c0_457 = arith.constant 0 : index
    %695 = tpu.strided_load %arg8[%c9_456, %c0_457] {strides = array<i32: 2, 1>} : memref<25x16xf32, #tpu.memory_space<vmem>>, vector<8x16xf32>
    %696 = arith.addf %694, %695 : vector<8x16xf32>
    %cst_458 = arith.constant 5.000000e-01 : f32
    %697 = vector.broadcast %cst_458 : f32 to vector<8x16xf32>
    %698 = arith.mulf %697, %696 : vector<8x16xf32>
    %699 = arith.truncf %698 : vector<8x16xf32> to vector<8x16xbf16>
    %c0_459 = arith.constant 0 : index
    %c7_460 = arith.constant 7 : index
    %c0_461 = arith.constant 0 : index
    %c0_462 = arith.constant 0 : index
    %700 = vector.load %arg7[%c0_459, %c7_460, %c0_461, %c0_462] : memref<1x8x8x16xbf16, #tpu.memory_space<vmem>>, vector<1x1x8x16xbf16>
    %701 = vector.shape_cast %700 : vector<1x1x8x16xbf16> to vector<8x16xbf16>
    %702 = vector.shape_cast %699 : vector<8x16xbf16> to vector<1x1x8x16xbf16>
    tpu.vector_store %arg7[%c0_459, %c7_460, %c0_461, %c0_462], %702 {strides = array<i32>} : memref<1x8x8x16xbf16, #tpu.memory_space<vmem>>, vector<1x1x8x16xbf16>,
    return
  }
  func.func @transform_0(%arg0: i32, %arg1: i32) -> (i32, i32, i32, i32) {
    %c0_i32 = arith.constant 0 : i32
    %c0_i32_0 = arith.constant 0 : i32
    %c0_i32_1 = arith.constant 0 : i32
    return %arg0, %c0_i32, %c0_i32_0, %arg1 : i32, i32, i32, i32
  }
  func.func @transform_1(%arg0: i32, %arg1: i32) -> (i32, i32) {
    %c0_i32 = arith.constant 0 : i32
    %c0_i32_0 = arith.constant 0 : i32
    %c0_i32_1 = arith.constant 0 : i32
    return %c0_i32, %c0_i32_0 : i32, i32
  }
  func.func @transform_2(%arg0: i32, %arg1: i32) -> (i32, i32) {
    %c0_i32 = arith.constant 0 : i32
    %c0_i32_0 = arith.constant 0 : i32
    %c0_i32_1 = arith.constant 0 : i32
    return %c0_i32, %c0_i32_0 : i32, i32
  }
  func.func @transform_3(%arg0: i32, %arg1: i32) -> (i32, i32) {
    %c0_i32 = arith.constant 0 : i32
    %c0_i32_0 = arith.constant 0 : i32
    %c0_i32_1 = arith.constant 0 : i32
    return %c0_i32, %c0_i32_0 : i32, i32
  }
  func.func @transform_4(%arg0: i32, %arg1: i32) -> (i32, i32) {
    %c0_i32 = arith.constant 0 : i32
    %c0_i32_0 = arith.constant 0 : i32
    %c0_i32_1 = arith.constant 0 : i32
    return %c0_i32, %c0_i32_0 : i32, i32
  }
  func.func @transform_5(%arg0: i32, %arg1: i32) -> (i32, i32, i32, i32) {
    %c0_i32 = arith.constant 0 : i32
    %c0_i32_0 = arith.constant 0 : i32
    %c0_i32_1 = arith.constant 0 : i32
    return %arg0, %c0_i32, %c0_i32_0, %arg1 : i32, i32, i32, i32
  }
}

</mosaic_0001>

<llo_original>
// kernel: tpu_custom_call.1
$region0: #{tpu_custom_call.1}
  #allocation0 [shape = 'u32[]', space=smem, size = 0x4, offset = 0x4, fixed_abs, tag = 'smem constant byte address 0x4 - core index']
  #allocation1 [shape = 'u32[144,128]{1,0:T(1,128)}', space=vmem, size = 0x12000, scoped, tag = 'internal scratch']
  #allocation2 [shape = 'f32[25,16]{1,0:T(8,128)}', space=vmem, size = 0x4000, scoped, tag = 'scratch operand']
  %s0 = inlined_call_operand.hbm [shape: f32[2,4,16,16], index: 0, kind: input, shape index: {}]
  %s1 = inlined_call_operand.vmem [shape: f32[12,8], index: 1, kind: input, shape index: {}]
  %s2 = inlined_call_operand.vmem [shape: f32[1,8], index: 2, kind: input, shape index: {}]
  %s3 = inlined_call_operand.vmem [shape: f32[3,8], index: 3, kind: input, shape index: {}]
  %s4 = inlined_call_operand.vmem [shape: f32[1,8], index: 4, kind: input, shape index: {}]
  %s5 = inlined_call_operand.hbm [shape: bf16[2,8,8,16], index: 5, kind: output, shape index: {}]
  %s6 = sld [smem:[#allocation0]]
  $region73: #{tpu_custom_call.1} parent=0
    _
  %s8 = ssub.s32 1, %s6
  %s9 = scalar_select 0, %s8, %s6
  $region1: #{tpu_custom_call.1} parent=0
    #allocation3 [shape = 'u8[65536]{0}', space=vmem, size = 0x10000, scoped, tag = 'input window, operand 0']
    #allocation4 [shape = 's32[2]{0}', space=sflag, size = 0x8, scoped, tag = 'scoped memory for tpu_custom_call.1']
    #allocation5 [shape = 's32[2]{0}', space=sflag, size = 0x8, scoped, tag = 'scoped memory for tpu_custom_call.1']
    #allocation6 [shape = 's32[2]{0}', space=sflag, size = 0x8, scoped, tag = 'scoped memory for tpu_custom_call.1']
    #allocation7 [shape = 'u8[8192]{0}', space=smem, size = 0x2000, scoped, tag = 'input window, operand 1, single buffered']
    #allocation8 [shape = 'u8[512]{0}', space=smem, size = 0x200, scoped, tag = 'input window, operand 2, single buffered']
    #allocation9 [shape = 's32[1]{0}', space=sflag, size = 0x4, scoped, tag = 'scoped memory for tpu_custom_call.1']
    #allocation10 [shape = 'u8[2048]{0}', space=smem, size = 0x800, scoped, tag = 'input window, operand 3, single buffered']
    #allocation11 [shape = 'u8[512]{0}', space=smem, size = 0x200, scoped, tag = 'input window, operand 4, single buffered']
    #allocation12 [shape = 's32[1]{0}', space=sflag, size = 0x4, scoped, tag = 'scoped memory for tpu_custom_call.1']
    #allocation13 [shape = 'u8[32768]{0}', space=vmem, size = 0x8000, scoped, tag = 'output window, operand 0']
    %10 = vsyncpa [#allocation4], 0
    %s11 = scalar_lea.sflag [#allocation4], 1
    %12 = vsyncpa %s11, 0
    %13 = vsyncpa [#allocation6], 0
    %14 = vsyncpa [#allocation9], 0
    %15 = vsyncpa [#allocation12], 0
    %16 = vsyncpa [#allocation5], 0
    %s17 = scalar_lea.sflag [#allocation5], 1
    %18 = vsyncpa %s17, 0
    loop: start=0, step=1, limit=4
    $region2: #{tpu_custom_call.1} parent=1 // loop_pre_header
      _
    $region3: #{tpu_custom_call.1} parent=1 // loop_header
      %s20 = sphi 0, %s24
      %p21 = scmp.ge.s32.totalorder %s20, 4
      %s27 = sphi 0, %s39
      %s28 = sphi 0, %s35
      %s29 = sphi 0, %s27
      %s30 = sphi 0, %s28
      %s31 = sphi 0, %s29
      %s32 = sphi 0, %s30
      %s44 = sphi 0, %s46
      %s47 = sphi 0, %s44
      %s48 = sphi 0, %s47
      %s64 = sphi 0, %s48
      %s68 = sphi 0, %s68
      %s70 = sphi 0, %s68
      %s71 = sphi 0, %s70
      %s85 = sphi 0, %s71
      %s89 = sphi 0, %s89
      %s91 = sphi 0, %s89
      %s92 = sphi 0, %s91
      %s106 = sphi 0, %s92
      %s110 = sphi 0, %s110
      %s112 = sphi 0, %s110
      %s113 = sphi 0, %s112
      %s127 = sphi 0, %s113
      %s131 = sphi 0, %s131
      %s133 = sphi 0, %s131
      %s134 = sphi 0, %s133
      %s148 = sphi 0, %s134
      %s156 = sphi 0, %s158
      %s159 = sphi 0, %s156
      %s160 = sphi 0, %s159
      %s176 = sphi 0, %s160
    $region4: #{tpu_custom_call.1} parent=1 // loop_header_branch
      %23 = sbr.rel (%p21) target = $region8
    $region5: #{tpu_custom_call.1} parent=1 // loop_body
      %s25 = ssub.s32 %s20, 1
      %s26 = ssub.s32 %s20, 2
      %s33 = sadd.s32 1, %s28
      %p34 = scmp.ge.s32.totalorder %s33, 1
      %s35 = scalar_select %p34, 0, %s33
      %s36 = sadd.s32 1, %s27
      %s37 = scalar_select %p34, %s36, %s27
      %p38 = scmp.ge.s32.totalorder %s37, 2
      %s39 = scalar_select %p38, 0, %s37
      %s40 = ssub.s32 %s27, %s39
      %s41 = ssub.s32 %s28, %s35
      %s42 = sor.u32 %s40, %s41
      %p43 = scmp.eq.s32.totalorder %s42, 0
      %s45 = sadd.s32 %s44, 1
      %s46 = scalar_select %p43, %s44, %s45
      %p49 = pneg %p43
      %p50 = scmp.eq.s32.totalorder %s20, 1
      %p51 = por %p49, %p50
      %p52 = scmp.ne.s32.totalorder %s44, %s47
      %p53 = scmp.eq.s32.totalorder %s20, 0
      %p54 = por %p52, %p53
      %p55 = scmp.ne.s32.totalorder %s44, %s47
      %p56 = scmp.eq.s32.totalorder %s25, 1
      %p57 = por %p55, %p56
      %p58 = scmp.ne.s32.totalorder %s47, %s48
      %p59 = scmp.eq.s32.totalorder %s25, 0
      %p60 = por %p58, %p59
      %p61 = scmp.ne.s32.totalorder %s47, %s48
      %p62 = scmp.eq.s32.totalorder %s26, 1
      %p63 = por %p61, %p62
      %p65 = scmp.ne.s32.totalorder %s48, %s64
      %p66 = scmp.eq.s32.totalorder %s26, 0
      %p67 = por %p65, %p66
      %s69 = sadd.s32 %s68, 1
      %p72 = scmp.eq.s32.totalorder %s20, 1
      %p73 = scmp.ne.s32.totalorder %s68, %s70
      %p74 = scmp.eq.s32.totalorder %s20, 0
      %p75 = por %p73, %p74
      %p76 = scmp.ne.s32.totalorder %s68, %s70
      %p77 = scmp.eq.s32.totalorder %s25, 1
      %p78 = por %p76, %p77
      %p79 = scmp.ne.s32.totalorder %s70, %s71
      %p80 = scmp.eq.s32.totalorder %s25, 0
      %p81 = por %p79, %p80
      %p82 = scmp.ne.s32.totalorder %s70, %s71
      %p83 = scmp.eq.s32.totalorder %s26, 1
      %p84 = por %p82, %p83
      %p86 = scmp.ne.s32.totalorder %s71, %s85
      %p87 = scmp.eq.s32.totalorder %s26, 0
      %p88 = por %p86, %p87
      %s90 = sadd.s32 %s89, 1
      %p93 = scmp.eq.s32.totalorder %s20, 1
      %p94 = scmp.ne.s32.totalorder %s89, %s91
      %p95 = scmp.eq.s32.totalorder %s20, 0
      %p96 = por %p94, %p95
      %p97 = scmp.ne.s32.totalorder %s89, %s91
      %p98 = scmp.eq.s32.totalorder %s25, 1
      %p99 = por %p97, %p98
      %p100 = scmp.ne.s32.totalorder %s91, %s92
      %p101 = scmp.eq.s32.totalorder %s25, 0
      %p102 = por %p100, %p101
      %p103 = scmp.ne.s32.totalorder %s91, %s92
      %p104 = scmp.eq.s32.totalorder %s26, 1
      %p105 = por %p103, %p104
      %p107 = scmp.ne.s32.totalorder %s92, %s106
      %p108 = scmp.eq.s32.totalorder %s26, 0
      %p109 = por %p107, %p108
      %s111 = sadd.s32 %s110, 1
      %p114 = scmp.eq.s32.totalorder %s20, 1
      %p115 = scmp.ne.s32.totalorder %s110, %s112
      %p116 = scmp.eq.s32.totalorder %s20, 0
      %p117 = por %p115, %p116
      %p118 = scmp.ne.s32.totalorder %s110, %s112
      %p119 = scmp.eq.s32.totalorder %s25, 1
      %p120 = por %p118, %p119
      %p121 = scmp.ne.s32.totalorder %s112, %s113
      %p122 = scmp.eq.s32.totalorder %s25, 0
      %p123 = por %p121, %p122
      %p124 = scmp.ne.s32.totalorder %s112, %s113
      %p125 = scmp.eq.s32.totalorder %s26, 1
      %p126 = por %p124, %p125
      %p128 = scmp.ne.s32.totalorder %s113, %s127
      %p129 = scmp.eq.s32.totalorder %s26, 0
      %p130 = por %p128, %p129
      %s132 = sadd.s32 %s131, 1
      %p135 = scmp.eq.s32.totalorder %s20, 1
      %p136 = scmp.ne.s32.totalorder %s131, %s133
      %p137 = scmp.eq.s32.totalorder %s20, 0
      %p138 = por %p136, %p137
      %p139 = scmp.ne.s32.totalorder %s131, %s133
      %p140 = scmp.eq.s32.totalorder %s25, 1
      %p141 = por %p139, %p140
      %p142 = scmp.ne.s32.totalorder %s133, %s134
      %p143 = scmp.eq.s32.totalorder %s25, 0
      %p144 = por %p142, %p143
      %p145 = scmp.ne.s32.totalorder %s133, %s134
      %p146 = scmp.eq.s32.totalorder %s26, 1
      %p147 = por %p145, %p146
      %p149 = scmp.ne.s32.totalorder %s134, %s148
      %p150 = scmp.eq.s32.totalorder %s26, 0
      %p151 = por %p149, %p150
      %s152 = ssub.s32 %s27, %s39
      %s153 = ssub.s32 %s28, %s35
      %s154 = sor.u32 %s152, %s153
      %p155 = scmp.eq.s32.totalorder %s154, 0
      %s157 = sadd.s32 %s156, 1
      %s158 = scalar_select %p155, %s156, %s157
      %p161 = pneg %p155
      %p162 = scmp.eq.s32.totalorder %s20, 1
      %p163 = por %p161, %p162
      %p164 = scmp.ne.s32.totalorder %s156, %s159
      %p165 = scmp.eq.s32.totalorder %s20, 0
      %p166 = por %p164, %p165
      %p167 = scmp.ne.s32.totalorder %s156, %s159
      %p168 = scmp.eq.s32.totalorder %s25, 1
      %p169 = por %p167, %p168
      %p170 = scmp.ne.s32.totalorder %s159, %s160
      %p171 = scmp.eq.s32.totalorder %s25, 0
      %p172 = por %p170, %p171
      %p173 = scmp.ne.s32.totalorder %s159, %s160
      %p174 = scmp.eq.s32.totalorder %s26, 1
      %p175 = por %p173, %p174
      %p177 = scmp.ne.s32.totalorder %s160, %s176
      %p178 = scmp.eq.s32.totalorder %s26, 0
      %p179 = por %p177, %p178
      %p180 = scmp.le.s32.totalorder 1, %s20
      %p181 = scmp.lt.s32.totalorder %s20, 3
      %p182 = pnand %p180, %p181
      %p183 = pneg %p182
      // Predicated region
      $region9: #{tpu_custom_call.1} parent=5 // pred_check
        _
      $region10: #{tpu_custom_call.1} parent=5 // pred_check_branch
        %185 = sbr.rel (%p182) target = $region12
      $region11: #{tpu_custom_call.1} parent=5 // pred_region
        %s186 = ssub.s32 %s20, 1
        // Predicated region
        $region13: #{tpu_custom_call.1} parent=11 // pred_check
          %p187 = pneg %p81
        $region14: #{tpu_custom_call.1} parent=11 // pred_check_branch
          %189 = sbr.rel (%p187) target = $region16
        $region15: #{tpu_custom_call.1} parent=11 // pred_region
          %s191 = ssub.s32 256, 256
          %192 = vsyncadd [#allocation6], %s191
          %s193 = sshll.u32 %s1, 4
          %s194 = int_to_ptr.vmem [resolvable:$true] %s193
          %199 = dma.vmem_to_smem %s194, 256, [#allocation7], [#allocation6], 128, 128, 8
        $region16: #{tpu_custom_call.1} parent=11 // pred_fallthru
          _
        // Predicated region
        $region17: #{tpu_custom_call.1} parent=11 // pred_check
          %p200 = pneg %p102
        $region18: #{tpu_custom_call.1} parent=11 // pred_check_branch
          %202 = sbr.rel (%p200) target = $region20
        $region19: #{tpu_custom_call.1} parent=11 // pred_region
          %s204 = ssub.s32 16, 16
          %205 = vsyncadd [#allocation9], %s204
          %s207 = sshll.u32 %s2, 4
          %s208 = int_to_ptr.vmem [resolvable:$true] %s207
          %210 = dma.vmem_to_smem %s208, 16, [#allocation8], [#allocation9]
        $region20: #{tpu_custom_call.1} parent=11 // pred_fallthru
          _
        // Predicated region
        $region21: #{tpu_custom_call.1} parent=11 // pred_check
          %p211 = pneg %p123
        $region22: #{tpu_custom_call.1} parent=11 // pred_check_branch
          %213 = sbr.rel (%p211) target = $region24
        $region23: #{tpu_custom_call.1} parent=11 // pred_region
          %s215 = ssub.s32 64, 64
          %216 = vsyncadd [#allocation9], %s215
          %s218 = sshll.u32 %s3, 4
          %s219 = int_to_ptr.vmem [resolvable:$true] %s218
          %221 = dma.vmem_to_smem %s219, 64, [#allocation10], [#allocation9]
        $region24: #{tpu_custom_call.1} parent=11 // pred_fallthru
          _
        // Predicated region
        $region25: #{tpu_custom_call.1} parent=11 // pred_check
          %p222 = pneg %p144
        $region26: #{tpu_custom_call.1} parent=11 // pred_check_branch
          %224 = sbr.rel (%p222) target = $region28
        $region27: #{tpu_custom_call.1} parent=11 // pred_region
          %s226 = ssub.s32 16, 16
          %227 = vsyncadd [#allocation12], %s226
          %s229 = sshll.u32 %s4, 4
          %s230 = int_to_ptr.vmem [resolvable:$true] %s229
          %232 = dma.vmem_to_smem %s230, 16, [#allocation11], [#allocation12]
        $region28: #{tpu_custom_call.1} parent=11 // pred_fallthru
          _
      $region12: #{tpu_custom_call.1} parent=5 // pred_fallthru
        _
      %p233 = scmp.lt.s32.totalorder %s20, 2
      // Predicated region
      $region29: #{tpu_custom_call.1} parent=5 // pred_check
        %p234 = pneg %p233
      $region30: #{tpu_custom_call.1} parent=5 // pred_check_branch
        %236 = sbr.rel (%p234) target = $region32
      $region31: #{tpu_custom_call.1} parent=5 // pred_region
        // Predicated region
        $region33: #{tpu_custom_call.1} parent=31 // pred_check
          %p237 = pneg %p54
        $region34: #{tpu_custom_call.1} parent=31 // pred_check_branch
          %239 = sbr.rel (%p237) target = $region36
        $region35: #{tpu_custom_call.1} parent=31 // pred_region
          %s240 = sand.u32 %s44, 1
          %s241 = scalar_lea.sflag [#allocation4], %s240
          %s242 = sand.u32 %s44, 1
          %s243 = smul.addr %s242, 64
          %s244 = scalar_lea.vmem [#allocation3], %s243
          %s246 = ssub.s32 1024, 1024
          %247 = vsyncadd %s241, %s246
          %s248 = smul.addr %s27, 8
          %s249 = sadd.s32 %s28, %s248
          %s250 = smul.addr %s249, 128
          %s251 = scalar_lea.hbm %s0, %s250
          %s252 = sshll.u32 %s244, 4
          %s253 = int_to_ptr.vmem [resolvable:$true] %s252
          %258 = dma.hbm_to_vmem [thread:$0]  %s251, 1024, %s253, %s241, 128, 128, 8
        $region36: #{tpu_custom_call.1} parent=31 // pred_fallthru
          _
      $region32: #{tpu_custom_call.1} parent=5 // pred_fallthru
        _
      %p259 = scmp.le.s32.totalorder 1, %s20
      %p260 = scmp.lt.s32.totalorder %s20, 3
      %p261 = pnand %p259, %p260
      %p262 = pneg %p261
      // Predicated region
      $region37: #{tpu_custom_call.1} parent=5 // pred_check
        _
      $region38: #{tpu_custom_call.1} parent=5 // pred_check_branch
        %264 = sbr.rel (%p261) target = $region40
      $region39: #{tpu_custom_call.1} parent=5 // pred_region
        %s265 = ssub.s32 %s20, 1
        %s266 = sand.u32 %s47, 1
        %s267 = scalar_lea.sflag [#allocation4], %s266
        %s268 = sand.u32 %s47, 1
        %s269 = smul.addr %s268, 64
        %s270 = scalar_lea.vmem [#allocation3], %s269
        // Predicated region
        $region41: #{tpu_custom_call.1} parent=39 // pred_check
          %p271 = pneg %p60
        $region42: #{tpu_custom_call.1} parent=39 // pred_check_branch
          %273 = sbr.rel (%p271) target = $region44
        $region43: #{tpu_custom_call.1} parent=39 // pred_region
          %274 = dma.done %s267, 1024
        $region44: #{tpu_custom_call.1} parent=39 // pred_fallthru
          _
        // Predicated region
        $region45: #{tpu_custom_call.1} parent=39 // pred_check
          %p275 = pneg %p81
        $region46: #{tpu_custom_call.1} parent=39 // pred_check_branch
          %277 = sbr.rel (%p275) target = $region48
        $region47: #{tpu_custom_call.1} parent=39 // pred_region
          %278 = dma.done [#allocation6], 256
        $region48: #{tpu_custom_call.1} parent=39 // pred_fallthru
          _
        // Predicated region
        $region49: #{tpu_custom_call.1} parent=39 // pred_check
          %p279 = pneg %p102
        $region50: #{tpu_custom_call.1} parent=39 // pred_check_branch
          %281 = sbr.rel (%p279) target = $region52
        $region51: #{tpu_custom_call.1} parent=39 // pred_region
          %282 = dma.done [#allocation9], 16
        $region52: #{tpu_custom_call.1} parent=39 // pred_fallthru
          _
        // Predicated region
        $region53: #{tpu_custom_call.1} parent=39 // pred_check
          %p283 = pneg %p123
        $region54: #{tpu_custom_call.1} parent=39 // pred_check_branch
          %285 = sbr.rel (%p283) target = $region56
        $region55: #{tpu_custom_call.1} parent=39 // pred_region
          %286 = dma.done [#allocation9], 64
        $region56: #{tpu_custom_call.1} parent=39 // pred_fallthru
          _
        // Predicated region
        $region57: #{tpu_custom_call.1} parent=39 // pred_check
          %p287 = pneg %p144
        $region58: #{tpu_custom_call.1} parent=39 // pred_check_branch
          %289 = sbr.rel (%p287) target = $region60
        $region59: #{tpu_custom_call.1} parent=39 // pred_region
          %290 = dma.done [#allocation12], 16
        $region60: #{tpu_custom_call.1} parent=39 // pred_fallthru
          _
        %291 = sfence
        %s292 = sand.u32 %s47, 1
        %s293 = scalar_lea.sflag [#allocation4], %s292
        %s294 = sand.u32 %s47, 1
        %s295 = smul.addr %s294, 64
        %s296 = scalar_lea.vmem [#allocation3], %s295
        %p297 = pneg %p60
        %p298 = pneg %p57
        %p299 = pneg %p81
        %p300 = pneg %p78
        %p301 = pneg %p102
        %p302 = pneg %p99
        %p303 = pneg %p123
        %p304 = pneg %p120
        %p305 = pneg %p144
        %p306 = pneg %p141
        %p307 = pneg %p172
        %p308 = pneg %p169
        %s309 = sand.u32 %s159, 1
        %s310 = scalar_lea.sflag [#allocation5], %s309
        %s311 = sand.u32 %s159, 1
        %s312 = smul.addr %s311, 32
        %s313 = scalar_lea.vmem [#allocation13], %s312
        %vm314 = vcmask 122880
        %315 = vst.msk [vmem:[#allocation2 + $0x7] sm:$0x1] %vm314, 0.0
        %316 = vst.msk [vmem:[#allocation2 + $0x18] sm:$0x1] %vm314, 0.0
        %v317 = vld [vmem:[%s270] sm:$0xff]
        %v318 = vld [vmem:[%s270 + $0x8] sm:$0xff]
        %vm319 = vcmask 130048
        %320 = vst.msk [vmem:[#allocation2 + $0x8] sm:$0xff] %vm319, %v317
        %321 = vst.msk [vmem:[#allocation2 + $0x10] sm:$0xff] %vm319, %v318
        %v322 = vld [vmem:[#allocation2 + $0x7] sm:$0xff]
        %v323 = vld [vmem:[#allocation2 + $0xf] sm:$0xff]
        %v324 = vld [vmem:[#allocation2 + $0x9] sm:$0xff]
        %v325 = vld [vmem:[#allocation2 + $0x11] sm:$0xff]
        %s326 = sld [smem:[#allocation7]]
        %v327 = vstv %s326
        %v328 = vmul.f32 %v327, %v322
        %v329 = vmul.f32 %v327, %v323
        %s330 = sld [smem:[#allocation7 + $0x200]]
        %v331 = vstv %s330
        %v332 = vmul.f32 %v331, %v317
        %v333 = vmul.f32 %v331, %v318
        %v334 = vadd.f32 %v328, %v332
        %v335 = vadd.f32 %v329, %v333
        %s336 = sld [smem:[#allocation7 + $0x400]]
        %v337 = vstv %s336
        %v338 = vmul.f32 %v337, %v324
        %v339 = vmul.f32 %v337, %v325
        %v340 = vadd.f32 %v334, %v338
        %v341 = vadd.f32 %v335, %v339
        %s342 = sld [smem:[#allocation7 + $0x1]]
        %v343 = vstv %s342
        %v344 = vmul.f32 %v343, %v322
        %v345 = vmul.f32 %v343, %v323
        %s346 = sld [smem:[#allocation7 + $0x201]]
        %v347 = vstv %s346
        %v348 = vmul.f32 %v347, %v317
        %v349 = vmul.f32 %v347, %v318
        %v350 = vadd.f32 %v344, %v348
        %v351 = vadd.f32 %v345, %v349
        %s352 = sld [smem:[#allocation7 + $0x401]]
        %v353 = vstv %s352
        %v354 = vmul.f32 %v353, %v324
        %v355 = vmul.f32 %v353, %v325
        %v356 = vadd.f32 %v350, %v354
        %v357 = vadd.f32 %v351, %v355
        %s358 = sld [smem:[#allocation7 + $0x2]]
        %v359 = vstv %s358
        %v360 = vmul.f32 %v359, %v322
        %v361 = vmul.f32 %v359, %v323
        %s362 = sld [smem:[#allocation7 + $0x202]]
        %v363 = vstv %s362
        %v364 = vmul.f32 %v363, %v317
        %v365 = vmul.f32 %v363, %v318
        %v366 = vadd.f32 %v360, %v364
        %v367 = vadd.f32 %v361, %v365
        %s368 = sld [smem:[#allocation7 + $0x402]]
        %v369 = vstv %s368
        %v370 = vmul.f32 %v369, %v324
        %v371 = vmul.f32 %v369, %v325
        %v372 = vadd.f32 %v366, %v370
        %v373 = vadd.f32 %v367, %v371
        %s374 = sld [smem:[#allocation7 + $0x3]]
        %v375 = vstv %s374
        %v376 = vmul.f32 %v375, %v322
        %v377 = vmul.f32 %v375, %v323
        %s378 = sld [smem:[#allocation7 + $0x203]]
        %v379 = vstv %s378
        %v380 = vmul.f32 %v379, %v317
        %v381 = vmul.f32 %v379, %v318
        %v382 = vadd.f32 %v376, %v380
        %v383 = vadd.f32 %v377, %v381
        %s384 = sld [smem:[#allocation7 + $0x403]]
        %v385 = vstv %s384
        %v386 = vmul.f32 %v385, %v324
        %v387 = vmul.f32 %v385, %v325
        %v388 = vadd.f32 %v382, %v386
        %v389 = vadd.f32 %v383, %v387
        %s390 = sld [smem:[#allocation7 + $0x4]]
        %v391 = vstv %s390
        %v392 = vmul.f32 %v391, %v322
        %v393 = vmul.f32 %v391, %v323
        %s394 = sld [smem:[#allocation7 + $0x204]]
        %v395 = vstv %s394
        %v396 = vmul.f32 %v395, %v317
        %v397 = vmul.f32 %v395, %v318
        %v398 = vadd.f32 %v392, %v396
        %v399 = vadd.f32 %v393, %v397
        %s400 = sld [smem:[#allocation7 + $0x404]]
        %v401 = vstv %s400
        %v402 = vmul.f32 %v401, %v324
        %v403 = vmul.f32 %v401, %v325
        %v404 = vadd.f32 %v398, %v402
        %v405 = vadd.f32 %v399, %v403
        %s406 = sld [smem:[#allocation7 + $0x5]]
        %v407 = vstv %s406
        %v408 = vmul.f32 %v407, %v322
        %v409 = vmul.f32 %v407, %v323
        %s410 = sld [smem:[#allocation7 + $0x205]]
        %v411 = vstv %s410
        %v412 = vmul.f32 %v411, %v317
        %v413 = vmul.f32 %v411, %v318
        %v414 = vadd.f32 %v408, %v412
        %v415 = vadd.f32 %v409, %v413
        %s416 = sld [smem:[#allocation7 + $0x405]]
        %v417 = vstv %s416
        %v418 = vmul.f32 %v417, %v324
        %v419 = vmul.f32 %v417, %v325
        %v420 = vadd.f32 %v414, %v418
        %v421 = vadd.f32 %v415, %v419
        %s422 = sld [smem:[#allocation7 + $0x6]]
        %v423 = vstv %s422
        %v424 = vmul.f32 %v423, %v322
        %v425 = vmul.f32 %v423, %v323
        %s426 = sld [smem:[#allocation7 + $0x206]]
        %v427 = vstv %s426
        %v428 = vmul.f32 %v427, %v317
        %v429 = vmul.f32 %v427, %v318
        %v430 = vadd.f32 %v424, %v428
        %v431 = vadd.f32 %v425, %v429
        %s432 = sld [smem:[#allocation7 + $0x406]]
        %v433 = vstv %s432
        %v434 = vmul.f32 %v433, %v324
        %v435 = vmul.f32 %v433, %v325
        %v436 = vadd.f32 %v430, %v434
        %v437 = vadd.f32 %v431, %v435
        %s438 = sld [smem:[#allocation7 + $0x7]]
        %v439 = vstv %s438
        %v440 = vmul.f32 %v439, %v322
        %v441 = vmul.f32 %v439, %v323
        %s442 = sld [smem:[#allocation7 + $0x207]]
        %v443 = vstv %s442
        %v444 = vmul.f32 %v443, %v317
        %v445 = vmul.f32 %v443, %v318
        %v446 = vadd.f32 %v440, %v444
        %v447 = vadd.f32 %v441, %v445
        %s448 = sld [smem:[#allocation7 + $0x407]]
        %v449 = vstv %s448
        %v450 = vmul.f32 %v449, %v324
        %v451 = vmul.f32 %v449, %v325
        %v452 = vadd.f32 %v446, %v450
        %v453 = vadd.f32 %v447, %v451
        %s454 = scalar_lea.vmem %s270, 16 [#allocation3]
        %v455 = vld [vmem:[%s454] sm:$0xff]
        %v456 = vld [vmem:[%s454 + $0x8] sm:$0xff]
        %457 = vst.msk [vmem:[#allocation2 + $0x8] sm:$0xff] %vm319, %v455
        %458 = vst.msk [vmem:[#allocation2 + $0x10] sm:$0xff] %vm319, %v456
        %v459 = vld [vmem:[#allocation2 + $0x7] sm:$0xff]
        %v460 = vld [vmem:[#allocation2 + $0xf] sm:$0xff]
        %v461 = vld [vmem:[#allocation2 + $0x9] sm:$0xff]
        %v462 = vld [vmem:[#allocation2 + $0x11] sm:$0xff]
        %s463 = sld [smem:[#allocation7 + $0x80]]
        %v464 = vstv %s463
        %v465 = vmul.f32 %v464, %v459
        %v466 = vmul.f32 %v464, %v460
        %s467 = sld [smem:[#allocation7 + $0x280]]
        %v468 = vstv %s467
        %v469 = vmul.f32 %v468, %v455
        %v470 = vmul.f32 %v468, %v456
        %v471 = vadd.f32 %v465, %v469
        %v472 = vadd.f32 %v466, %v470
        %s473 = sld [smem:[#allocation7 + $0x480]]
        %v474 = vstv %s473
        %v475 = vmul.f32 %v474, %v461
        %v476 = vmul.f32 %v474, %v462
        %v477 = vadd.f32 %v471, %v475
        %v478 = vadd.f32 %v472, %v476
        %v479 = vadd.f32 %v340, %v477
        %v480 = vadd.f32 %v341, %v478
        %s481 = sld [smem:[#allocation7 + $0x81]]
        %v482 = vstv %s481
        %v483 = vmul.f32 %v482, %v459
        %v484 = vmul.f32 %v482, %v460
        %s485 = sld [smem:[#allocation7 + $0x281]]
        %v486 = vstv %s485
        %v487 = vmul.f32 %v486, %v455
        %v488 = vmul.f32 %v486, %v456
        %v489 = vadd.f32 %v483, %v487
        %v490 = vadd.f32 %v484, %v488
        %s491 = sld [smem:[#allocation7 + $0x481]]
        %v492 = vstv %s491
        %v493 = vmul.f32 %v492, %v461
        %v494 = vmul.f32 %v492, %v462
        %v495 = vadd.f32 %v489, %v493
        %v496 = vadd.f32 %v490, %v494
        %v497 = vadd.f32 %v356, %v495
        %v498 = vadd.f32 %v357, %v496
        %s499 = sld [smem:[#allocation7 + $0x82]]
        %v500 = vstv %s499
        %v501 = vmul.f32 %v500, %v459
        %v502 = vmul.f32 %v500, %v460
        %s503 = sld [smem:[#allocation7 + $0x282]]
        %v504 = vstv %s503
        %v505 = vmul.f32 %v504, %v455
        %v506 = vmul.f32 %v504, %v456
        %v507 = vadd.f32 %v501, %v505
        %v508 = vadd.f32 %v502, %v506
        %s509 = sld [smem:[#allocation7 + $0x482]]
        %v510 = vstv %s509
        %v511 = vmul.f32 %v510, %v461
        %v512 = vmul.f32 %v510, %v462
        %v513 = vadd.f32 %v507, %v511
        %v514 = vadd.f32 %v508, %v512
        %v515 = vadd.f32 %v372, %v513
        %v516 = vadd.f32 %v373, %v514
        %s517 = sld [smem:[#allocation7 + $0x83]]
        %v518 = vstv %s517
        %v519 = vmul.f32 %v518, %v459
        %v520 = vmul.f32 %v518, %v460
        %s521 = sld [smem:[#allocation7 + $0x283]]
        %v522 = vstv %s521
        %v523 = vmul.f32 %v522, %v455
        %v524 = vmul.f32 %v522, %v456
        %v525 = vadd.f32 %v519, %v523
        %v526 = vadd.f32 %v520, %v524
        %s527 = sld [smem:[#allocation7 + $0x483]]
        %v528 = vstv %s527
        %v529 = vmul.f32 %v528, %v461
        %v530 = vmul.f32 %v528, %v462
        %v531 = vadd.f32 %v525, %v529
        %v532 = vadd.f32 %v526, %v530
        %v533 = vadd.f32 %v388, %v531
        %v534 = vadd.f32 %v389, %v532
        %s535 = sld [smem:[#allocation7 + $0x84]]
        %v536 = vstv %s535
        %v537 = vmul.f32 %v536, %v459
        %v538 = vmul.f32 %v536, %v460
        %s539 = sld [smem:[#allocation7 + $0x284]]
        %v540 = vstv %s539
        %v541 = vmul.f32 %v540, %v455
        %v542 = vmul.f32 %v540, %v456
        %v543 = vadd.f32 %v537, %v541
        %v544 = vadd.f32 %v538, %v542
        %s545 = sld [smem:[#allocation7 + $0x484]]
        %v546 = vstv %s545
        %v547 = vmul.f32 %v546, %v461
        %v548 = vmul.f32 %v546, %v462
        %v549 = vadd.f32 %v543, %v547
        %v550 = vadd.f32 %v544, %v548
        %v551 = vadd.f32 %v404, %v549
        %v552 = vadd.f32 %v405, %v550
        %s553 = sld [smem:[#allocation7 + $0x85]]
        %v554 = vstv %s553
        %v555 = vmul.f32 %v554, %v459
        %v556 = vmul.f32 %v554, %v460
        %s557 = sld [smem:[#allocation7 + $0x285]]
        %v558 = vstv %s557
        %v559 = vmul.f32 %v558, %v455
        %v560 = vmul.f32 %v558, %v456
        %v561 = vadd.f32 %v555, %v559
        %v562 = vadd.f32 %v556, %v560
        %s563 = sld [smem:[#allocation7 + $0x485]]
        %v564 = vstv %s563
        %v565 = vmul.f32 %v564, %v461
        %v566 = vmul.f32 %v564, %v462
        %v567 = vadd.f32 %v561, %v565
        %v568 = vadd.f32 %v562, %v566
        %v569 = vadd.f32 %v420, %v567
        %v570 = vadd.f32 %v421, %v568
        %s571 = sld [smem:[#allocation7 + $0x86]]
        %v572 = vstv %s571
        %v573 = vmul.f32 %v572, %v459
        %v574 = vmul.f32 %v572, %v460
        %s575 = sld [smem:[#allocation7 + $0x286]]
        %v576 = vstv %s575
        %v577 = vmul.f32 %v576, %v455
        %v578 = vmul.f32 %v576, %v456
        %v579 = vadd.f32 %v573, %v577
        %v580 = vadd.f32 %v574, %v578
        %s581 = sld [smem:[#allocation7 + $0x486]]
        %v582 = vstv %s581
        %v583 = vmul.f32 %v582, %v461
        %v584 = vmul.f32 %v582, %v462
        %v585 = vadd.f32 %v579, %v583
        %v586 = vadd.f32 %v580, %v584
        %v587 = vadd.f32 %v436, %v585
        %v588 = vadd.f32 %v437, %v586
        %s589 = sld [smem:[#allocation7 + $0x87]]
        %v590 = vstv %s589
        %v591 = vmul.f32 %v590, %v459
        %v592 = vmul.f32 %v590, %v460
        %s593 = sld [smem:[#allocation7 + $0x287]]
        %v594 = vstv %s593
        %v595 = vmul.f32 %v594, %v455
        %v596 = vmul.f32 %v594, %v456
        %v597 = vadd.f32 %v591, %v595
        %v598 = vadd.f32 %v592, %v596
        %s599 = sld [smem:[#allocation7 + $0x487]]
        %v600 = vstv %s599
        %v601 = vmul.f32 %v600, %v461
        %v602 = vmul.f32 %v600, %v462
        %v603 = vadd.f32 %v597, %v601
        %v604 = vadd.f32 %v598, %v602
        %v605 = vadd.f32 %v452, %v603
        %v606 = vadd.f32 %v453, %v604
        %s607 = scalar_lea.vmem %s270, 32 [#allocation3]
        %v608 = vld [vmem:[%s607] sm:$0xff]
        %v609 = vld [vmem:[%s607 + $0x8] sm:$0xff]
        %610 = vst.msk [vmem:[#allocation2 + $0x8] sm:$0xff] %vm319, %v608
        %611 = vst.msk [vmem:[#allocation2 + $0x10] sm:$0xff] %vm319, %v609
        %v612 = vld [vmem:[#allocation2 + $0x7] sm:$0xff]
        %v613 = vld [vmem:[#allocation2 + $0xf] sm:$0xff]
        %v614 = vld [vmem:[#allocation2 + $0x9] sm:$0xff]
        %v615 = vld [vmem:[#allocation2 + $0x11] sm:$0xff]
        %s616 = sld [smem:[#allocation7 + $0x100]]
        %v617 = vstv %s616
        %v618 = vmul.f32 %v617, %v612
        %v619 = vmul.f32 %v617, %v613
        %s620 = sld [smem:[#allocation7 + $0x300]]
        %v621 = vstv %s620
        %v622 = vmul.f32 %v621, %v608
        %v623 = vmul.f32 %v621, %v609
        %v624 = vadd.f32 %v618, %v622
        %v625 = vadd.f32 %v619, %v623
        %s626 = sld [smem:[#allocation7 + $0x500]]
        %v627 = vstv %s626
        %v628 = vmul.f32 %v627, %v614
        %v629 = vmul.f32 %v627, %v615
        %v630 = vadd.f32 %v624, %v628
        %v631 = vadd.f32 %v625, %v629
        %v632 = vadd.f32 %v479, %v630
        %v633 = vadd.f32 %v480, %v631
        %s634 = sld [smem:[#allocation7 + $0x101]]
        %v635 = vstv %s634
        %v636 = vmul.f32 %v635, %v612
        %v637 = vmul.f32 %v635, %v613
        %s638 = sld [smem:[#allocation7 + $0x301]]
        %v639 = vstv %s638
        %v640 = vmul.f32 %v639, %v608
        %v641 = vmul.f32 %v639, %v609
        %v642 = vadd.f32 %v636, %v640
        %v643 = vadd.f32 %v637, %v641
        %s644 = sld [smem:[#allocation7 + $0x501]]
        %v645 = vstv %s644
        %v646 = vmul.f32 %v645, %v614
        %v647 = vmul.f32 %v645, %v615
        %v648 = vadd.f32 %v642, %v646
        %v649 = vadd.f32 %v643, %v647
        %v650 = vadd.f32 %v497, %v648
        %v651 = vadd.f32 %v498, %v649
        %s652 = sld [smem:[#allocation7 + $0x102]]
        %v653 = vstv %s652
        %v654 = vmul.f32 %v653, %v612
        %v655 = vmul.f32 %v653, %v613
        %s656 = sld [smem:[#allocation7 + $0x302]]
        %v657 = vstv %s656
        %v658 = vmul.f32 %v657, %v608
        %v659 = vmul.f32 %v657, %v609
        %v660 = vadd.f32 %v654, %v658
        %v661 = vadd.f32 %v655, %v659
        %s662 = sld [smem:[#allocation7 + $0x502]]
        %v663 = vstv %s662
        %v664 = vmul.f32 %v663, %v614
        %v665 = vmul.f32 %v663, %v615
        %v666 = vadd.f32 %v660, %v664
        %v667 = vadd.f32 %v661, %v665
        %v668 = vadd.f32 %v515, %v666
        %v669 = vadd.f32 %v516, %v667
        %s670 = sld [smem:[#allocation7 + $0x103]]
        %v671 = vstv %s670
        %v672 = vmul.f32 %v671, %v612
        %v673 = vmul.f32 %v671, %v613
        %s674 = sld [smem:[#allocation7 + $0x303]]
        %v675 = vstv %s674
        %v676 = vmul.f32 %v675, %v608
        %v677 = vmul.f32 %v675, %v609
        %v678 = vadd.f32 %v672, %v676
        %v679 = vadd.f32 %v673, %v677
        %s680 = sld [smem:[#allocation7 + $0x503]]
        %v681 = vstv %s680
        %v682 = vmul.f32 %v681, %v614
        %v683 = vmul.f32 %v681, %v615
        %v684 = vadd.f32 %v678, %v682
        %v685 = vadd.f32 %v679, %v683
        %v686 = vadd.f32 %v533, %v684
        %v687 = vadd.f32 %v534, %v685
        %s688 = sld [smem:[#allocation7 + $0x104]]
        %v689 = vstv %s688
        %v690 = vmul.f32 %v689, %v612
        %v691 = vmul.f32 %v689, %v613
        %s692 = sld [smem:[#allocation7 + $0x304]]
        %v693 = vstv %s692
        %v694 = vmul.f32 %v693, %v608
        %v695 = vmul.f32 %v693, %v609
        %v696 = vadd.f32 %v690, %v694
        %v697 = vadd.f32 %v691, %v695
        %s698 = sld [smem:[#allocation7 + $0x504]]
        %v699 = vstv %s698
        %v700 = vmul.f32 %v699, %v614
        %v701 = vmul.f32 %v699, %v615
        %v702 = vadd.f32 %v696, %v700
        %v703 = vadd.f32 %v697, %v701
        %v704 = vadd.f32 %v551, %v702
        %v705 = vadd.f32 %v552, %v703
        %s706 = sld [smem:[#allocation7 + $0x105]]
        %v707 = vstv %s706
        %v708 = vmul.f32 %v707, %v612
        %v709 = vmul.f32 %v707, %v613
        %s710 = sld [smem:[#allocation7 + $0x305]]
        %v711 = vstv %s710
        %v712 = vmul.f32 %v711, %v608
        %v713 = vmul.f32 %v711, %v609
        %v714 = vadd.f32 %v708, %v712
        %v715 = vadd.f32 %v709, %v713
        %s716 = sld [smem:[#allocation7 + $0x505]]
        %v717 = vstv %s716
        %v718 = vmul.f32 %v717, %v614
        %v719 = vmul.f32 %v717, %v615
        %v720 = vadd.f32 %v714, %v718
        %v721 = vadd.f32 %v715, %v719
        %v722 = vadd.f32 %v569, %v720
        %v723 = vadd.f32 %v570, %v721
        %s724 = sld [smem:[#allocation7 + $0x106]]
        %v725 = vstv %s724
        %v726 = vmul.f32 %v725, %v612
        %v727 = vmul.f32 %v725, %v613
        %s728 = sld [smem:[#allocation7 + $0x306]]
        %v729 = vstv %s728
        %v730 = vmul.f32 %v729, %v608
        %v731 = vmul.f32 %v729, %v609
        %v732 = vadd.f32 %v726, %v730
        %v733 = vadd.f32 %v727, %v731
        %s734 = sld [smem:[#allocation7 + $0x506]]
        %v735 = vstv %s734
        %v736 = vmul.f32 %v735, %v614
        %v737 = vmul.f32 %v735, %v615
        %v738 = vadd.f32 %v732, %v736
        %v739 = vadd.f32 %v733, %v737
        %v740 = vadd.f32 %v587, %v738
        %v741 = vadd.f32 %v588, %v739
        %s742 = sld [smem:[#allocation7 + $0x107]]
        %v743 = vstv %s742
        %v744 = vmul.f32 %v743, %v612
        %v745 = vmul.f32 %v743, %v613
        %s746 = sld [smem:[#allocation7 + $0x307]]
        %v747 = vstv %s746
        %v748 = vmul.f32 %v747, %v608
        %v749 = vmul.f32 %v747, %v609
        %v750 = vadd.f32 %v744, %v748
        %v751 = vadd.f32 %v745, %v749
        %s752 = sld [smem:[#allocation7 + $0x507]]
        %v753 = vstv %s752
        %v754 = vmul.f32 %v753, %v614
        %v755 = vmul.f32 %v753, %v615
        %v756 = vadd.f32 %v750, %v754
        %v757 = vadd.f32 %v751, %v755
        %v758 = vadd.f32 %v605, %v756
        %v759 = vadd.f32 %v606, %v757
        %s760 = scalar_lea.vmem %s270, 48 [#allocation3]
        %v761 = vld [vmem:[%s760] sm:$0xff]
        %v762 = vld [vmem:[%s760 + $0x8] sm:$0xff]
        %763 = vst.msk [vmem:[#allocation2 + $0x8] sm:$0xff] %vm319, %v761
        %764 = vst.msk [vmem:[#allocation2 + $0x10] sm:$0xff] %vm319, %v762
        %v765 = vld [vmem:[#allocation2 + $0x7] sm:$0xff]
        %v766 = vld [vmem:[#allocation2 + $0xf] sm:$0xff]
        %v767 = vld [vmem:[#allocation2 + $0x9] sm:$0xff]
        %v768 = vld [vmem:[#allocation2 + $0x11] sm:$0xff]
        %s769 = sld [smem:[#allocation7 + $0x180]]
        %v770 = vstv %s769
        %v771 = vmul.f32 %v770, %v765
        %v772 = vmul.f32 %v770, %v766
        %s773 = sld [smem:[#allocation7 + $0x380]]
        %v774 = vstv %s773
        %v775 = vmul.f32 %v774, %v761
        %v776 = vmul.f32 %v774, %v762
        %v777 = vadd.f32 %v771, %v775
        %v778 = vadd.f32 %v772, %v776
        %s779 = sld [smem:[#allocation7 + $0x580]]
        %v780 = vstv %s779
        %v781 = vmul.f32 %v780, %v767
        %v782 = vmul.f32 %v780, %v768
        %v783 = vadd.f32 %v777, %v781
        %v784 = vadd.f32 %v778, %v782
        %v785 = vadd.f32 %v632, %v783
        %v786 = vadd.f32 %v633, %v784
        %s787 = sld [smem:[#allocation7 + $0x181]]
        %v788 = vstv %s787
        %v789 = vmul.f32 %v788, %v765
        %v790 = vmul.f32 %v788, %v766
        %s791 = sld [smem:[#allocation7 + $0x381]]
        %v792 = vstv %s791
        %v793 = vmul.f32 %v792, %v761
        %v794 = vmul.f32 %v792, %v762
        %v795 = vadd.f32 %v789, %v793
        %v796 = vadd.f32 %v790, %v794
        %s797 = sld [smem:[#allocation7 + $0x581]]
        %v798 = vstv %s797
        %v799 = vmul.f32 %v798, %v767
        %v800 = vmul.f32 %v798, %v768
        %v801 = vadd.f32 %v795, %v799
        %v802 = vadd.f32 %v796, %v800
        %v803 = vadd.f32 %v650, %v801
        %v804 = vadd.f32 %v651, %v802
        %s805 = sld [smem:[#allocation7 + $0x182]]
        %v806 = vstv %s805
        %v807 = vmul.f32 %v806, %v765
        %v808 = vmul.f32 %v806, %v766
        %s809 = sld [smem:[#allocation7 + $0x382]]
        %v810 = vstv %s809
        %v811 = vmul.f32 %v810, %v761
        %v812 = vmul.f32 %v810, %v762
        %v813 = vadd.f32 %v807, %v811
        %v814 = vadd.f32 %v808, %v812
        %s815 = sld [smem:[#allocation7 + $0x582]]
        %v816 = vstv %s815
        %v817 = vmul.f32 %v816, %v767
        %v818 = vmul.f32 %v816, %v768
        %v819 = vadd.f32 %v813, %v817
        %v820 = vadd.f32 %v814, %v818
        %v821 = vadd.f32 %v668, %v819
        %v822 = vadd.f32 %v669, %v820
        %s823 = sld [smem:[#allocation7 + $0x183]]
        %v824 = vstv %s823
        %v825 = vmul.f32 %v824, %v765
        %v826 = vmul.f32 %v824, %v766
        %s827 = sld [smem:[#allocation7 + $0x383]]
        %v828 = vstv %s827
        %v829 = vmul.f32 %v828, %v761
        %v830 = vmul.f32 %v828, %v762
        %v831 = vadd.f32 %v825, %v829
        %v832 = vadd.f32 %v826, %v830
        %s833 = sld [smem:[#allocation7 + $0x583]]
        %v834 = vstv %s833
        %v835 = vmul.f32 %v834, %v767
        %v836 = vmul.f32 %v834, %v768
        %v837 = vadd.f32 %v831, %v835
        %v838 = vadd.f32 %v832, %v836
        %v839 = vadd.f32 %v686, %v837
        %v840 = vadd.f32 %v687, %v838
        %s841 = sld [smem:[#allocation7 + $0x184]]
        %v842 = vstv %s841
        %v843 = vmul.f32 %v842, %v765
        %v844 = vmul.f32 %v842, %v766
        %s845 = sld [smem:[#allocation7 + $0x384]]
        %v846 = vstv %s845
        %v847 = vmul.f32 %v846, %v761
        %v848 = vmul.f32 %v846, %v762
        %v849 = vadd.f32 %v843, %v847
        %v850 = vadd.f32 %v844, %v848
        %s851 = sld [smem:[#allocation7 + $0x584]]
        %v852 = vstv %s851
        %v853 = vmul.f32 %v852, %v767
        %v854 = vmul.f32 %v852, %v768
        %v855 = vadd.f32 %v849, %v853
        %v856 = vadd.f32 %v850, %v854
        %v857 = vadd.f32 %v704, %v855
        %v858 = vadd.f32 %v705, %v856
        %s859 = sld [smem:[#allocation7 + $0x185]]
        %v860 = vstv %s859
        %v861 = vmul.f32 %v860, %v765
        %v862 = vmul.f32 %v860, %v766
        %s863 = sld [smem:[#allocation7 + $0x385]]
        %v864 = vstv %s863
        %v865 = vmul.f32 %v864, %v761
        %v866 = vmul.f32 %v864, %v762
        %v867 = vadd.f32 %v861, %v865
        %v868 = vadd.f32 %v862, %v866
        %s869 = sld [smem:[#allocation7 + $0x585]]
        %v870 = vstv %s869
        %v871 = vmul.f32 %v870, %v767
        %v872 = vmul.f32 %v870, %v768
        %v873 = vadd.f32 %v867, %v871
        %v874 = vadd.f32 %v868, %v872
        %v875 = vadd.f32 %v722, %v873
        %v876 = vadd.f32 %v723, %v874
        %s877 = sld [smem:[#allocation7 + $0x186]]
        %v878 = vstv %s877
        %v879 = vmul.f32 %v878, %v765
        %v880 = vmul.f32 %v878, %v766
        %s881 = sld [smem:[#allocation7 + $0x386]]
        %v882 = vstv %s881
        %v883 = vmul.f32 %v882, %v761
        %v884 = vmul.f32 %v882, %v762
        %v885 = vadd.f32 %v879, %v883
        %v886 = vadd.f32 %v880, %v884
        %s887 = sld [smem:[#allocation7 + $0x586]]
        %v888 = vstv %s887
        %v889 = vmul.f32 %v888, %v767
        %v890 = vmul.f32 %v888, %v768
        %v891 = vadd.f32 %v885, %v889
        %v892 = vadd.f32 %v886, %v890
        %v893 = vadd.f32 %v740, %v891
        %v894 = vadd.f32 %v741, %v892
        %s895 = sld [smem:[#allocation7 + $0x187]]
        %v896 = vstv %s895
        %v897 = vmul.f32 %v896, %v765
        %v898 = vmul.f32 %v896, %v766
        %s899 = sld [smem:[#allocation7 + $0x387]]
        %v900 = vstv %s899
        %v901 = vmul.f32 %v900, %v761
        %v902 = vmul.f32 %v900, %v762
        %v903 = vadd.f32 %v897, %v901
        %v904 = vadd.f32 %v898, %v902
        %s905 = sld [smem:[#allocation7 + $0x587]]
        %v906 = vstv %s905
        %v907 = vmul.f32 %v906, %v767
        %v908 = vmul.f32 %v906, %v768
        %v909 = vadd.f32 %v903, %v907
        %v910 = vadd.f32 %v904, %v908
        %v911 = vadd.f32 %v758, %v909
        %v912 = vadd.f32 %v759, %v910
        %s913 = sld [smem:[#allocation8]]
        %v914 = vstv %s913
        %v915 = vadd.f32 %v785, %v914
        %v916 = vadd.f32 %v786, %v914
        %917 = vst.msk [vmem:[#allocation2 + $0x8] sm:$0xff] %vm319, %v915
        %918 = vst.msk [vmem:[#allocation2 + $0x10] sm:$0xff] %vm319, %v916
        %s919 = sld [smem:[#allocation10 + $0x80]]
        %v920 = vstv %s919
        %v921 = vmul.f32 %v920, %v915
        %v922 = vmul.f32 %v920, %v916
        %s923 = sld [smem:[#allocation10]]
        %v924 = vld [vmem:[#allocation2 + $0x7] sm:$0xff]
        %v925 = vld [vmem:[#allocation2 + $0xf] sm:$0xff]
        %v926 = vstv %s923
        %v927 = vmul.f32 %v926, %v924
        %v928 = vmul.f32 %v926, %v925
        %v929 = vadd.f32 %v921, %v927
        %v930 = vadd.f32 %v922, %v928
        %s931 = sld [smem:[#allocation10 + $0x100]]
        %v932 = vld [vmem:[#allocation2 + $0x9] sm:$0xff]
        %v933 = vld [vmem:[#allocation2 + $0x11] sm:$0xff]
        %v934 = vstv %s931
        %v935 = vmul.f32 %v934, %v932
        %v936 = vmul.f32 %v934, %v933
        %v937 = vadd.f32 %v929, %v935
        %v938 = vadd.f32 %v930, %v936
        %s939 = sld [smem:[#allocation11]]
        %v940 = vstv %s939
        %v941 = vadd.f32 %v937, %v940
        %v942 = vadd.f32 %v938, %v940
        %s943 = sld [smem:[#allocation8 + $0x1]]
        %v944 = vstv %s943
        %v945 = vadd.f32 %v803, %v944
        %v946 = vadd.f32 %v804, %v944
        %947 = vst.msk [vmem:[#allocation2 + $0x8] sm:$0xff] %vm319, %v945
        %948 = vst.msk [vmem:[#allocation2 + $0x10] sm:$0xff] %vm319, %v946
        %s949 = sld [smem:[#allocation10 + $0x81]]
        %v950 = vstv %s949
        %v951 = vmul.f32 %v950, %v945
        %v952 = vmul.f32 %v950, %v946
        %s953 = sld [smem:[#allocation10 + $0x1]]
        %v954 = vld [vmem:[#allocation2 + $0x7] sm:$0xff]
        %v955 = vld [vmem:[#allocation2 + $0xf] sm:$0xff]
        %v956 = vstv %s953
        %v957 = vmul.f32 %v956, %v954
        %v958 = vmul.f32 %v956, %v955
        %v959 = vadd.f32 %v951, %v957
        %v960 = vadd.f32 %v952, %v958
        %s961 = sld [smem:[#allocation10 + $0x101]]
        %v962 = vld [vmem:[#allocation2 + $0x9] sm:$0xff]
        %v963 = vld [vmem:[#allocation2 + $0x11] sm:$0xff]
        %v964 = vstv %s961
        %v965 = vmul.f32 %v964, %v962
        %v966 = vmul.f32 %v964, %v963
        %v967 = vadd.f32 %v959, %v965
        %v968 = vadd.f32 %v960, %v966
        %s969 = sld [smem:[#allocation11 + $0x1]]
        %v970 = vstv %s969
        %v971 = vadd.f32 %v967, %v970
        %v972 = vadd.f32 %v968, %v970
        %s973 = sld [smem:[#allocation8 + $0x2]]
        %v974 = vstv %s973
        %v975 = vadd.f32 %v821, %v974
        %v976 = vadd.f32 %v822, %v974
        %977 = vst.msk [vmem:[#allocation2 + $0x8] sm:$0xff] %vm319, %v975
        %978 = vst.msk [vmem:[#allocation2 + $0x10] sm:$0xff] %vm319, %v976
        %s979 = sld [smem:[#allocation10 + $0x82]]
        %v980 = vstv %s979
        %v981 = vmul.f32 %v980, %v975
        %v982 = vmul.f32 %v980, %v976
        %s983 = sld [smem:[#allocation10 + $0x2]]
        %v984 = vld [vmem:[#allocation2 + $0x7] sm:$0xff]
        %v985 = vld [vmem:[#allocation2 + $0xf] sm:$0xff]
        %v986 = vstv %s983
        %v987 = vmul.f32 %v986, %v984
        %v988 = vmul.f32 %v986, %v985
        %v989 = vadd.f32 %v981, %v987
        %v990 = vadd.f32 %v982, %v988
        %s991 = sld [smem:[#allocation10 + $0x102]]
        %v992 = vld [vmem:[#allocation2 + $0x9] sm:$0xff]
        %v993 = vld [vmem:[#allocation2 + $0x11] sm:$0xff]
        %v994 = vstv %s991
        %v995 = vmul.f32 %v994, %v992
        %v996 = vmul.f32 %v994, %v993
        %v997 = vadd.f32 %v989, %v995
        %v998 = vadd.f32 %v990, %v996
        %s999 = sld [smem:[#allocation11 + $0x2]]
        %v1000 = vstv %s999
        %v1001 = vadd.f32 %v997, %v1000
        %v1002 = vadd.f32 %v998, %v1000
        %s1003 = sld [smem:[#allocation8 + $0x3]]
        %v1004 = vstv %s1003
        %v1005 = vadd.f32 %v839, %v1004
        %v1006 = vadd.f32 %v840, %v1004
        %1007 = vst.msk [vmem:[#allocation2 + $0x8] sm:$0xff] %vm319, %v1005
        %1008 = vst.msk [vmem:[#allocation2 + $0x10] sm:$0xff] %vm319, %v1006
        %s1009 = sld [smem:[#allocation10 + $0x83]]
        %v1010 = vstv %s1009
        %v1011 = vmul.f32 %v1010, %v1005
        %v1012 = vmul.f32 %v1010, %v1006
        %s1013 = sld [smem:[#allocation10 + $0x3]]
        %v1014 = vld [vmem:[#allocation2 + $0x7] sm:$0xff]
        %v1015 = vld [vmem:[#allocation2 + $0xf] sm:$0xff]
        %v1016 = vstv %s1013
        %v1017 = vmul.f32 %v1016, %v1014
        %v1018 = vmul.f32 %v1016, %v1015
        %v1019 = vadd.f32 %v1011, %v1017
        %v1020 = vadd.f32 %v1012, %v1018
        %s1021 = sld [smem:[#allocation10 + $0x103]]
        %v1022 = vld [vmem:[#allocation2 + $0x9] sm:$0xff]
        %v1023 = vld [vmem:[#allocation2 + $0x11] sm:$0xff]
        %v1024 = vstv %s1021
        %v1025 = vmul.f32 %v1024, %v1022
        %v1026 = vmul.f32 %v1024, %v1023
        %v1027 = vadd.f32 %v1019, %v1025
        %v1028 = vadd.f32 %v1020, %v1026
        %s1029 = sld [smem:[#allocation11 + $0x3]]
        %v1030 = vstv %s1029
        %v1031 = vadd.f32 %v1027, %v1030
        %v1032 = vadd.f32 %v1028, %v1030
        %s1033 = sld [smem:[#allocation8 + $0x4]]
        %v1034 = vstv %s1033
        %v1035 = vadd.f32 %v857, %v1034
        %v1036 = vadd.f32 %v858, %v1034
        %1037 = vst.msk [vmem:[#allocation2 + $0x8] sm:$0xff] %vm319, %v1035
        %1038 = vst.msk [vmem:[#allocation2 + $0x10] sm:$0xff] %vm319, %v1036
        %s1039 = sld [smem:[#allocation10 + $0x84]]
        %v1040 = vstv %s1039
        %v1041 = vmul.f32 %v1040, %v1035
        %v1042 = vmul.f32 %v1040, %v1036
        %s1043 = sld [smem:[#allocation10 + $0x4]]
        %v1044 = vld [vmem:[#allocation2 + $0x7] sm:$0xff]
        %v1045 = vld [vmem:[#allocation2 + $0xf] sm:$0xff]
        %v1046 = vstv %s1043
        %v1047 = vmul.f32 %v1046, %v1044
        %v1048 = vmul.f32 %v1046, %v1045
        %v1049 = vadd.f32 %v1041, %v1047
        %v1050 = vadd.f32 %v1042, %v1048
        %s1051 = sld [smem:[#allocation10 + $0x104]]
        %v1052 = vld [vmem:[#allocation2 + $0x9] sm:$0xff]
        %v1053 = vld [vmem:[#allocation2 + $0x11] sm:$0xff]
        %v1054 = vstv %s1051
        %v1055 = vmul.f32 %v1054, %v1052
        %v1056 = vmul.f32 %v1054, %v1053
        %v1057 = vadd.f32 %v1049, %v1055
        %v1058 = vadd.f32 %v1050, %v1056
        %s1059 = sld [smem:[#allocation11 + $0x4]]
        %v1060 = vstv %s1059
        %v1061 = vadd.f32 %v1057, %v1060
        %v1062 = vadd.f32 %v1058, %v1060
        %s1063 = sld [smem:[#allocation8 + $0x5]]
        %v1064 = vstv %s1063
        %v1065 = vadd.f32 %v875, %v1064
        %v1066 = vadd.f32 %v876, %v1064
        %1067 = vst.msk [vmem:[#allocation2 + $0x8] sm:$0xff] %vm319, %v1065
        %1068 = vst.msk [vmem:[#allocation2 + $0x10] sm:$0xff] %vm319, %v1066
        %s1069 = sld [smem:[#allocation10 + $0x85]]
        %v1070 = vstv %s1069
        %v1071 = vmul.f32 %v1070, %v1065
        %v1072 = vmul.f32 %v1070, %v1066
        %s1073 = sld [smem:[#allocation10 + $0x5]]
        %v1074 = vld [vmem:[#allocation2 + $0x7] sm:$0xff]
        %v1075 = vld [vmem:[#allocation2 + $0xf] sm:$0xff]
        %v1076 = vstv %s1073
        %v1077 = vmul.f32 %v1076, %v1074
        %v1078 = vmul.f32 %v1076, %v1075
        %v1079 = vadd.f32 %v1071, %v1077
        %v1080 = vadd.f32 %v1072, %v1078
        %s1081 = sld [smem:[#allocation10 + $0x105]]
        %v1082 = vld [vmem:[#allocation2 + $0x9] sm:$0xff]
        %v1083 = vld [vmem:[#allocation2 + $0x11] sm:$0xff]
        %v1084 = vstv %s1081
        %v1085 = vmul.f32 %v1084, %v1082
        %v1086 = vmul.f32 %v1084, %v1083
        %v1087 = vadd.f32 %v1079, %v1085
        %v1088 = vadd.f32 %v1080, %v1086
        %s1089 = sld [smem:[#allocation11 + $0x5]]
        %v1090 = vstv %s1089
        %v1091 = vadd.f32 %v1087, %v1090
        %v1092 = vadd.f32 %v1088, %v1090
        %s1093 = sld [smem:[#allocation8 + $0x6]]
        %v1094 = vstv %s1093
        %v1095 = vadd.f32 %v893, %v1094
        %v1096 = vadd.f32 %v894, %v1094
        %1097 = vst.msk [vmem:[#allocation2 + $0x8] sm:$0xff] %vm319, %v1095
        %1098 = vst.msk [vmem:[#allocation2 + $0x10] sm:$0xff] %vm319, %v1096
        %s1099 = sld [smem:[#allocation10 + $0x86]]
        %v1100 = vstv %s1099
        %v1101 = vmul.f32 %v1100, %v1095
        %v1102 = vmul.f32 %v1100, %v1096
        %s1103 = sld [smem:[#allocation10 + $0x6]]
        %v1104 = vld [vmem:[#allocation2 + $0x7] sm:$0xff]
        %v1105 = vld [vmem:[#allocation2 + $0xf] sm:$0xff]
        %v1106 = vstv %s1103
        %v1107 = vmul.f32 %v1106, %v1104
        %v1108 = vmul.f32 %v1106, %v1105
        %v1109 = vadd.f32 %v1101, %v1107
        %v1110 = vadd.f32 %v1102, %v1108
        %s1111 = sld [smem:[#allocation10 + $0x106]]
        %v1112 = vld [vmem:[#allocation2 + $0x9] sm:$0xff]
        %v1113 = vld [vmem:[#allocation2 + $0x11] sm:$0xff]
        %v1114 = vstv %s1111
        %v1115 = vmul.f32 %v1114, %v1112
        %v1116 = vmul.f32 %v1114, %v1113
        %v1117 = vadd.f32 %v1109, %v1115
        %v1118 = vadd.f32 %v1110, %v1116
        %s1119 = sld [smem:[#allocation11 + $0x6]]
        %v1120 = vstv %s1119
        %v1121 = vadd.f32 %v1117, %v1120
        %v1122 = vadd.f32 %v1118, %v1120
        %s1123 = sld [smem:[#allocation8 + $0x7]]
        %v1124 = vstv %s1123
        %v1125 = vadd.f32 %v911, %v1124
        %v1126 = vadd.f32 %v912, %v1124
        %1127 = vst.msk [vmem:[#allocation2 + $0x8] sm:$0xff] %vm319, %v1125
        %1128 = vst.msk [vmem:[#allocation2 + $0x10] sm:$0xff] %vm319, %v1126
        %s1129 = sld [smem:[#allocation10 + $0x87]]
        %v1130 = vstv %s1129
        %v1131 = vmul.f32 %v1130, %v1125
        %v1132 = vmul.f32 %v1130, %v1126
        %s1133 = sld [smem:[#allocation10 + $0x7]]
        %v1134 = vld [vmem:[#allocation2 + $0x7] sm:$0xff]
        %v1135 = vld [vmem:[#allocation2 + $0xf] sm:$0xff]
        %v1136 = vstv %s1133
        %v1137 = vmul.f32 %v1136, %v1134
        %v1138 = vmul.f32 %v1136, %v1135
        %v1139 = vadd.f32 %v1131, %v1137
        %v1140 = vadd.f32 %v1132, %v1138
        %s1141 = sld [smem:[#allocation10 + $0x107]]
        %v1142 = vld [vmem:[#allocation2 + $0x9] sm:$0xff]
        %v1143 = vld [vmem:[#allocation2 + $0x11] sm:$0xff]
        %v1144 = vstv %s1141
        %v1145 = vmul.f32 %v1144, %v1142
        %v1146 = vmul.f32 %v1144, %v1143
        %v1147 = vadd.f32 %v1139, %v1145
        %v1148 = vadd.f32 %v1140, %v1146
        %s1149 = sld [smem:[#allocation11 + $0x7]]
        %v1150 = vstv %s1149
        %v1151 = vadd.f32 %v1147, %v1150
        %v1152 = vadd.f32 %v1148, %v1150
        %vm1153 = vcmp.gt.f32.partialorder %v941, 0.0
        %vm1154 = vcmp.gt.f32.partialorder %v942, 0.0
        %v1155 = vmin.f32 %v941, 0.0
        %v1156 = vmin.f32 %v942, 0.0
        %v1157 = vmul.f32 %v1155, 1.442695
        %v1158 = vpow.pop %v1157
        %v1159 = vmul.f32 %v1156, 1.442695
        %v1160 = vpow.pop %v1159
        %v1161 = vsub.f32 %v1158, 1.0
        %v1162 = vsub.f32 %v1160, 1.0
        %v1163 = vsel %vm1153, %v941, %v1161
        %v1164 = vsel %vm1154, %v942, %v1162
        %1165 = vst.msk [vmem:[#allocation2 + $0x8] sm:$0xff] %vm319, %v1163
        %1166 = vst.msk [vmem:[#allocation2 + $0x10] sm:$0xff] %vm319, %v1164
        %s1167 = scalar_lea.vmem [#allocation2], 8
        %v1168 = vld [vmem:[%s1167] ss:$2 sm:$0xff]
        %s1169 = scalar_lea.vmem [#allocation2], 9
        %v1170 = vld [vmem:[%s1169] ss:$2 sm:$0xff]
        %v1171 = vadd.f32 %v1168, %v1170
        %v1172 = vmul.f32 %v1171, 0.5
        %v1173 = vpack.c.bf16 %v1172, %v1172
        %vm1174 = vcmask 125952
        %1175 = vst.msk [vmem:[%s313] sm:$0xf] %vm1174, %v1173
        %vm1176 = vcmp.gt.f32.partialorder %v971, 0.0
        %vm1177 = vcmp.gt.f32.partialorder %v972, 0.0
        %v1178 = vmin.f32 %v971, 0.0
        %v1179 = vmin.f32 %v972, 0.0
        %v1180 = vmul.f32 %v1178, 1.442695
        %v1181 = vpow.pop %v1180
        %v1182 = vmul.f32 %v1179, 1.442695
        %v1183 = vpow.pop %v1182
        %v1184 = vsub.f32 %v1181, 1.0
        %v1185 = vsub.f32 %v1183, 1.0
        %v1186 = vsel %vm1176, %v971, %v1184
        %v1187 = vsel %vm1177, %v972, %v1185
        %1188 = vst.msk [vmem:[#allocation2 + $0x8] sm:$0xff] %vm319, %v1186
        %1189 = vst.msk [vmem:[#allocation2 + $0x10] sm:$0xff] %vm319, %v1187
        %v1190 = vld [vmem:[%s1167] ss:$2 sm:$0xff]
        %v1191 = vld [vmem:[%s1169] ss:$2 sm:$0xff]
        %v1192 = vadd.f32 %v1190, %v1191
        %v1193 = vmul.f32 %v1192, 0.5
        %v1194 = vpack.c.bf16 %v1193, %v1193
        %s1195 = scalar_lea.vmem %s313, 4 [#allocation13]
        %1196 = vst.msk [vmem:[%s1195] sm:$0xf] %vm1174, %v1194
        %vm1197 = vcmp.gt.f32.partialorder %v1001, 0.0
        %vm1198 = vcmp.gt.f32.partialorder %v1002, 0.0
        %v1199 = vmin.f32 %v1001, 0.0
        %v1200 = vmin.f32 %v1002, 0.0
        %v1201 = vmul.f32 %v1199, 1.442695
        %v1202 = vpow.pop %v1201
        %v1203 = vmul.f32 %v1200, 1.442695
        %v1204 = vpow.pop %v1203
        %v1205 = vsub.f32 %v1202, 1.0
        %v1206 = vsub.f32 %v1204, 1.0
        %v1207 = vsel %vm1197, %v1001, %v1205
        %v1208 = vsel %vm1198, %v1002, %v1206
        %1209 = vst.msk [vmem:[#allocation2 + $0x8] sm:$0xff] %vm319, %v1207
        %1210 = vst.msk [vmem:[#allocation2 + $0x10] sm:$0xff] %vm319, %v1208
        %v1211 = vld [vmem:[%s1167] ss:$2 sm:$0xff]
        %v1212 = vld [vmem:[%s1169] ss:$2 sm:$0xff]
        %v1213 = vadd.f32 %v1211, %v1212
        %v1214 = vmul.f32 %v1213, 0.5
        %v1215 = vpack.c.bf16 %v1214, %v1214
        %s1216 = scalar_lea.vmem %s313, 8 [#allocation13]
        %1217 = vst.msk [vmem:[%s1216] sm:$0xf] %vm1174, %v1215
        %vm1218 = vcmp.gt.f32.partialorder %v1031, 0.0
        %vm1219 = vcmp.gt.f32.partialorder %v1032, 0.0
        %v1220 = vmin.f32 %v1031, 0.0
        %v1221 = vmin.f32 %v1032, 0.0
        %v1222 = vmul.f32 %v1220, 1.442695
        %v1223 = vpow.pop %v1222
        %v1224 = vmul.f32 %v1221, 1.442695
        %v1225 = vpow.pop %v1224
        %v1226 = vsub.f32 %v1223, 1.0
        %v1227 = vsub.f32 %v1225, 1.0
        %v1228 = vsel %vm1218, %v1031, %v1226
        %v1229 = vsel %vm1219, %v1032, %v1227
        %1230 = vst.msk [vmem:[#allocation2 + $0x8] sm:$0xff] %vm319, %v1228
        %1231 = vst.msk [vmem:[#allocation2 + $0x10] sm:$0xff] %vm319, %v1229
        %v1232 = vld [vmem:[%s1167] ss:$2 sm:$0xff]
        %v1233 = vld [vmem:[%s1169] ss:$2 sm:$0xff]
        %v1234 = vadd.f32 %v1232, %v1233
        %v1235 = vmul.f32 %v1234, 0.5
        %v1236 = vpack.c.bf16 %v1235, %v1235
        %s1237 = scalar_lea.vmem %s313, 12 [#allocation13]
        %1238 = vst.msk [vmem:[%s1237] sm:$0xf] %vm1174, %v1236
        %vm1239 = vcmp.gt.f32.partialorder %v1061, 0.0
        %vm1240 = vcmp.gt.f32.partialorder %v1062, 0.0
        %v1241 = vmin.f32 %v1061, 0.0
        %v1242 = vmin.f32 %v1062, 0.0
        %v1243 = vmul.f32 %v1241, 1.442695
        %v1244 = vpow.pop %v1243
        %v1245 = vmul.f32 %v1242, 1.442695
        %v1246 = vpow.pop %v1245
        %v1247 = vsub.f32 %v1244, 1.0
        %v1248 = vsub.f32 %v1246, 1.0
        %v1249 = vsel %vm1239, %v1061, %v1247
        %v1250 = vsel %vm1240, %v1062, %v1248
        %1251 = vst.msk [vmem:[#allocation2 + $0x8] sm:$0xff] %vm319, %v1249
        %1252 = vst.msk [vmem:[#allocation2 + $0x10] sm:$0xff] %vm319, %v1250
        %v1253 = vld [vmem:[%s1167] ss:$2 sm:$0xff]
        %v1254 = vld [vmem:[%s1169] ss:$2 sm:$0xff]
        %v1255 = vadd.f32 %v1253, %v1254
        %v1256 = vmul.f32 %v1255, 0.5
        %v1257 = vpack.c.bf16 %v1256, %v1256
        %s1258 = scalar_lea.vmem %s313, 16 [#allocation13]
        %1259 = vst.msk [vmem:[%s1258] sm:$0xf] %vm1174, %v1257
        %vm1260 = vcmp.gt.f32.partialorder %v1091, 0.0
        %vm1261 = vcmp.gt.f32.partialorder %v1092, 0.0
        %v1262 = vmin.f32 %v1091, 0.0
        %v1263 = vmin.f32 %v1092, 0.0
        %v1264 = vmul.f32 %v1262, 1.442695
        %v1265 = vpow.pop %v1264
        %v1266 = vmul.f32 %v1263, 1.442695
        %v1267 = vpow.pop %v1266
        %v1268 = vsub.f32 %v1265, 1.0
        %v1269 = vsub.f32 %v1267, 1.0
        %v1270 = vsel %vm1260, %v1091, %v1268
        %v1271 = vsel %vm1261, %v1092, %v1269
        %1272 = vst.msk [vmem:[#allocation2 + $0x8] sm:$0xff] %vm319, %v1270
        %1273 = vst.msk [vmem:[#allocation2 + $0x10] sm:$0xff] %vm319, %v1271
        %v1274 = vld [vmem:[%s1167] ss:$2 sm:$0xff]
        %v1275 = vld [vmem:[%s1169] ss:$2 sm:$0xff]
        %v1276 = vadd.f32 %v1274, %v1275
        %v1277 = vmul.f32 %v1276, 0.5
        %v1278 = vpack.c.bf16 %v1277, %v1277
        %s1279 = scalar_lea.vmem %s313, 20 [#allocation13]
        %1280 = vst.msk [vmem:[%s1279] sm:$0xf] %vm1174, %v1278
        %vm1281 = vcmp.gt.f32.partialorder %v1121, 0.0
        %vm1282 = vcmp.gt.f32.partialorder %v1122, 0.0
        %v1283 = vmin.f32 %v1121, 0.0
        %v1284 = vmin.f32 %v1122, 0.0
        %v1285 = vmul.f32 %v1283, 1.442695
        %v1286 = vpow.pop %v1285
        %v1287 = vmul.f32 %v1284, 1.442695
        %v1288 = vpow.pop %v1287
        %v1289 = vsub.f32 %v1286, 1.0
        %v1290 = vsub.f32 %v1288, 1.0
        %v1291 = vsel %vm1281, %v1121, %v1289
        %v1292 = vsel %vm1282, %v1122, %v1290
        %1293 = vst.msk [vmem:[#allocation2 + $0x8] sm:$0xff] %vm319, %v1291
        %1294 = vst.msk [vmem:[#allocation2 + $0x10] sm:$0xff] %vm319, %v1292
        %v1295 = vld [vmem:[%s1167] ss:$2 sm:$0xff]
        %v1296 = vld [vmem:[%s1169] ss:$2 sm:$0xff]
        %v1297 = vadd.f32 %v1295, %v1296
        %v1298 = vmul.f32 %v1297, 0.5
        %v1299 = vpack.c.bf16 %v1298, %v1298
        %s1300 = scalar_lea.vmem %s313, 24 [#allocation13]
        %1301 = vst.msk [vmem:[%s1300] sm:$0xf] %vm1174, %v1299
        %vm1302 = vcmp.gt.f32.partialorder %v1151, 0.0
        %vm1303 = vcmp.gt.f32.partialorder %v1152, 0.0
        %v1304 = vmin.f32 %v1151, 0.0
        %v1305 = vmin.f32 %v1152, 0.0
        %v1306 = vmul.f32 %v1304, 1.442695
        %v1307 = vpow.pop %v1306
        %v1308 = vmul.f32 %v1305, 1.442695
        %v1309 = vpow.pop %v1308
        %v1310 = vsub.f32 %v1307, 1.0
        %v1311 = vsub.f32 %v1309, 1.0
        %v1312 = vsel %vm1302, %v1151, %v1310
        %v1313 = vsel %vm1303, %v1152, %v1311
        %1314 = vst.msk [vmem:[#allocation2 + $0x8] sm:$0xff] %vm319, %v1312
        %1315 = vst.msk [vmem:[#allocation2 + $0x10] sm:$0xff] %vm319, %v1313
        %v1316 = vld [vmem:[%s1167] ss:$2 sm:$0xff]
        %v1317 = vld [vmem:[%s1169] ss:$2 sm:$0xff]
        %v1318 = vadd.f32 %v1316, %v1317
        %v1319 = vmul.f32 %v1318, 0.5
        %v1320 = vpack.c.bf16 %v1319, %v1319
        %s1321 = scalar_lea.vmem %s313, 28 [#allocation13]
        %1322 = vst.msk [vmem:[%s1321] sm:$0xf] %vm1174, %v1320
        %s1323 = sand.u32 %s159, 1
        %s1324 = scalar_lea.sflag [#allocation5], %s1323
        %s1325 = sand.u32 %s159, 1
        %s1326 = smul.addr %s1325, 32
        %s1327 = scalar_lea.vmem [#allocation13], %s1326
        // Predicated region
        $region61: #{tpu_custom_call.1} parent=39 // pred_check
          %p1328 = pneg %p169
        $region62: #{tpu_custom_call.1} parent=39 // pred_check_branch
          %1330 = sbr.rel (%p1328) target = $region64
        $region63: #{tpu_custom_call.1} parent=39 // pred_region
          %s1332 = ssub.s32 512, 512
          %1333 = vsyncadd %s1324, %s1332
          %s1334 = smul.addr %s29, 8
          %s1335 = sadd.s32 %s30, %s1334
          %s1336 = smul.addr %s1335, 64
          %s1337 = scalar_lea.hbm %s5, %s1336
          %s1338 = sshll.u32 %s1327, 4
          %s1339 = int_to_ptr.vmem [resolvable:$true] %s1338
          %1344 = dma.vmem_to_hbm [thread:$0]  %s1339, 512, %s1337, %s1324, 64, 64, 4
        $region64: #{tpu_custom_call.1} parent=39 // pred_fallthru
          _
      $region40: #{tpu_custom_call.1} parent=5 // pred_fallthru
        _
      %p1345 = scmp.le.s32.totalorder 2, %s20
      // Predicated region
      $region65: #{tpu_custom_call.1} parent=5 // pred_check
        %p1346 = pneg %p1345
      $region66: #{tpu_custom_call.1} parent=5 // pred_check_branch
        %1348 = sbr.rel (%p1346) target = $region68
      $region67: #{tpu_custom_call.1} parent=5 // pred_region
        %s1349 = ssub.s32 %s20, 2
        // Predicated region
        $region69: #{tpu_custom_call.1} parent=67 // pred_check
          %p1350 = pneg %p175
        $region70: #{tpu_custom_call.1} parent=67 // pred_check_branch
          %1352 = sbr.rel (%p1350) target = $region72
        $region71: #{tpu_custom_call.1} parent=67 // pred_region
          %s1353 = sand.u32 %s160, 1
          %s1354 = scalar_lea.sflag [#allocation5], %s1353
          %s1355 = sand.u32 %s160, 1
          %s1356 = smul.addr %s1355, 32
          %s1357 = scalar_lea.vmem [#allocation13], %s1356
          %1358 = dma.done %s1354, 512
        $region72: #{tpu_custom_call.1} parent=67 // pred_fallthru
          _
      $region68: #{tpu_custom_call.1} parent=5 // pred_fallthru
        _
    $region6: #{tpu_custom_call.1} parent=1 // loop_footer
      %s24 = sadd.s32 1, %s20
    $region7: #{tpu_custom_call.1} parent=1 // loop_footer_branch
      %19 = sbr.rel target = $region3
    $region8: #{tpu_custom_call.1} parent=1 // loop_exit
      _
    %1359 = vsyncpa [#allocation4], 1
    %s1360 = scalar_lea.sflag [#allocation4], 1
    %1361 = vsyncpa %s1360, 1
    %1362 = vsyncpa [#allocation5], 1
    %s1363 = scalar_lea.sflag [#allocation5], 1
    %1364 = vsyncpa %s1363, 1
    %1365 = vsyncpa [#allocation6], 1
    %s1366 = scalar_lea.sflag [#allocation6], 1
    %1367 = vsyncpa %s1366, 1
    %1368 = vsyncpa [#allocation9], 1
    %1369 = vsyncpa [#allocation12], 1

</llo_original>
